<compile_context>
chip_gen: v6e
topology: v6e:2x2x1
jax: 0.10.0
libtpu: 0.0.40
codegen_flags: <defaults>
</compile_context>

<pallas_src>
import functools

import jax
import jax.numpy as jnp
from jax.experimental import pallas as pl
from jax.experimental.pallas import tpu as pltpu

# ---- fixed module configuration (mirrors AuxNet(__init__) args) ------------
B_LAYERS = 2      # no_of_base_layers
A_LAYERS = 3      # no_of_aux_layers
E_LAYERS = 2      # no_of_end_layers
HIDDEN = 32       # nodes_in_each_layer
IN_DIM = 4        # input_shape
OUT_DIM = 2       # output_shape
NUM_LAYERS = B_LAYERS + A_LAYERS + E_LAYERS + 1   # 8 heads / logits rows
NH = NUM_LAYERS * OUT_DIM                          # 16 fused head lanes

# ---- per-example packed input lanes ----------------------------------------
IN_LANES = 16
L_BF = 0          # lanes 0:4   base_feature
L_X = 4           # lanes 4:7   aux scalar inputs
L_M = 8           # lanes 8:11  aux present mask
L_ONE = 12        # lane 12     constant 1.0 (folds biases/constants into matmuls)

# ---- dense parameter slab layout (rows x 128 lanes, f32) --------------------
R_FIRST = 0       # rows 0:16   lanes 0:96 aux Linear(1,H) weight+bias per block,
                  #             lanes 96:128 base layer-0 weight + bias
R_META = 16       # rows 16:32  gamma / ensemble-weight broadcast matrix
R_SQ = 32         # rows 32:64  [base_W1 | mid_W | end_W1 | end_W0 middle block]
R_EA = 64         # rows 64:160 lanes 0:32 end_W0 aux blocks (96,32),
                  #             lanes 32:48 aux output heads (96,16, block-diag),
                  #             rows 64:96 lanes 48:128 slotted heads (h1,h2,e1,e2,mid),
                  #             rows 96:112 lanes 48:64 2-lane swap permutation
R_PLACE = 160     # rows 160:176 output placement (identity into lanes 0:16 +
                  #              head row-sum / ensemble logit into lanes 16:18)
R_BIAS = 176      # row 176: [base_b1 | mid_b | end_b0 | end_b1]; row 177: head biases
SLAB_ROWS = 184
SLAB_COLS = 128
OUT_LANES = 128   # single lane-dense output row per example


def auxnet_kernel(p_ref, x_ref, o_ref):
    f32 = jnp.float32
    H, A = HIDDEN, A_LAYERS
    AH = A * H                                            # 96

    def dot(a, b):
        return jnp.dot(a, b, preferred_element_type=f32)

    inp = x_ref[...]                                      # (TB, 16)

    # ---- packed parameters (static slices of the resident slab) ------------
    firstw = p_ref[R_FIRST:R_FIRST + IN_LANES, :]         # (16, 128)
    metaw = p_ref[R_META:R_META + IN_LANES, :]            # (16, 128)
    sqw = p_ref[R_SQ:R_SQ + H, :]                         # (32, 128)
    ew0a = p_ref[R_EA:R_EA + AH, 0:H]                     # (96, 32)
    auxheadw = p_ref[R_EA:R_EA + AH, H:H + NH]            # (96, 16)
    h1w = p_ref[R_EA:R_EA + H, 48:64]                     # (32, 16) slotted heads
    h2w = p_ref[R_EA:R_EA + H, 64:80]
    e1w = p_ref[R_EA:R_EA + H, 80:96]
    e2w = p_ref[R_EA:R_EA + H, 96:112]
    midw = p_ref[R_EA:R_EA + H, 112:128]
    swapw = p_ref[R_EA + H:R_EA + H + NH, 48:64]          # (16, 16)
    placew = p_ref[R_PLACE:R_PLACE + NH, :]               # (16, 128)
    biasrow = p_ref[R_BIAS:R_BIAS + 1, :]                 # (1, 128)
    headb = p_ref[R_BIAS + 1:R_BIAS + 2, 0:NH]            # (1, 16)

    bb1 = biasrow[:, 0:H]
    mb = biasrow[:, H:2 * H]
    eb0 = biasrow[:, 2 * H:3 * H]
    eb1 = biasrow[:, 3 * H:4 * H]

    # ---- stage 1: everything that depends only on the raw input ------------
    act = jnp.maximum(dot(inp, firstw), 0.0)              # (TB, 128)
    aux_h = act[:, 0:AH]                                  # (TB, 96) relu(x_i*W_i + b_i) per aux block
    h1 = act[:, AH:AH + H]                                # (TB, 32) base layer 0
    meta = dot(inp, metaw)                                # (TB, 128) raw gamma / weight terms

    rg = 1.0 / meta[:, 96:97]                             # 1/sum(masked gamma) -- no 0-guard, like PyTorch
    ga = meta[:, 0:AH] * rg                               # normalized gamma per aux lane block (0 if absent)
    gm = meta[:, 97:98] * rg                              # normalized gamma for the middle block
    w16 = meta[:, 112:128] * (1.0 / meta[:, 98:99])       # normalized ensemble weights per head lane

    # ---- base trunk ----------------------------------------------------------
    h2 = jnp.maximum(dot(h1, sqw[:, 0:H]) + bb1, 0.0)
    middle = jnp.maximum(dot(h2, sqw[:, H:2 * H]) + mb, 0.0)

    # ---- end trunk: flattened Linear((A+1)*H, H) as two lane-block matmuls ---
    e1 = jnp.maximum(dot(aux_h * ga, ew0a)
                     + dot(middle * gm, sqw[:, 3 * H:4 * H]) + eb0, 0.0)
    e2 = jnp.maximum(dot(e1, sqw[:, 2 * H:3 * H]) + eb1, 0.0)

    # ---- all 8 output heads, each landing in its own pair of lanes ----------
    z = (dot(h1, h1w) + dot(h2, h2w) + dot(aux_h, auxheadw)
         + dot(e1, e1w) + dot(e2, e2w) + dot(middle, midw) + headb)  # (TB, 16)
    zo = dot(z, swapw)                                     # partner logit of each lane
    prob = 1.0 / (1.0 + jnp.exp(zo - z))                   # exact 2-class softmax per head

    weighted = prob * w16                                  # (TB, 16) weighted per-head probs
    # lanes 0:16 = weighted rows, lanes 16:18 = ensemble logit, rest 0.
    o_ref[...] = dot(weighted, placew)                     # single lane-dense store


# ---------------------------------------------------------------------------
# Host-side packing
# ---------------------------------------------------------------------------
def pack_params(params):
    """Pack all AuxNet parameters + every constant selector into one dense slab."""
    f32 = jnp.float32
    H, A, OD = HIDDEN, A_LAYERS, OUT_DIM
    AH = A * H
    lw = jnp.asarray(params["layer_weights"], f32).reshape(NUM_LAYERS)
    P = jnp.zeros((SLAB_ROWS, SLAB_COLS), f32)

    # FIRST: aux Linear(1,H) per lane block (weights + bias via constant lane),
    # base layer 0 (weights + bias) in lanes 96:128.
    first = jnp.zeros((IN_LANES, SLAB_COLS), f32)
    for i in range(A):
        first = first.at[L_X + i, i * H:(i + 1) * H].set(params["aux_W"][i].astype(f32))
        first = first.at[L_ONE, i * H:(i + 1) * H].set(params["aux_b"][i].astype(f32))
    first = first.at[L_BF:L_BF + IN_DIM, AH:AH + H].set(params["base_W0"].astype(f32))
    first = first.at[L_ONE, AH:AH + H].set(params["base_b0"].reshape(H).astype(f32))
    P = P.at[R_FIRST:R_FIRST + IN_LANES, :].set(first)

    # META: cols 0:96 masked gamma_raw broadcast per aux block, col 96 gamma sum,
    # col 97 middle gamma, col 98 ensemble-weight sum, cols 112:128 per-head weights.
    meta = jnp.zeros((IN_LANES, SLAB_COLS), f32)
    for i in range(A):
        g = lw[B_LAYERS + i]
        meta = meta.at[L_M + i, i * H:(i + 1) * H].set(g)
        meta = meta.at[L_M + i, 96].set(g)
        meta = meta.at[L_M + i, 98].set(g)
        meta = meta.at[L_M + i, 112 + 2 * (B_LAYERS + i)].set(g)
        meta = meta.at[L_M + i, 113 + 2 * (B_LAYERS + i)].set(g)
    meta = meta.at[L_ONE, 96].set(lw[NUM_LAYERS - 1])
    meta = meta.at[L_ONE, 97].set(lw[NUM_LAYERS - 1])
    always = (0, 1, NUM_LAYERS - 3, NUM_LAYERS - 2, NUM_LAYERS - 1)
    meta = meta.at[L_ONE, 98].set(jnp.sum(lw[jnp.array(always)]))
    for r in always:
        meta = meta.at[L_ONE, 112 + 2 * r].set(lw[r])
        meta = meta.at[L_ONE, 113 + 2 * r].set(lw[r])
    P = P.at[R_META:R_META + IN_LANES, :].set(meta)

    # SQ: the four (32,32) square weight matrices side by side in lanes.
    sq = jnp.zeros((H, SLAB_COLS), f32)
    sq = sq.at[:, 0:H].set(params["base_W1"].astype(f32))
    sq = sq.at[:, H:2 * H].set(params["mid_W"].astype(f32))
    sq = sq.at[:, 2 * H:3 * H].set(params["end_W1"].astype(f32))
    sq = sq.at[:, 3 * H:4 * H].set(params["end_W0"][A].astype(f32))
    P = P.at[R_SQ:R_SQ + H, :].set(sq)

    # EA block: end_W0 aux blocks, aux heads (block diag), slotted heads, swap perm.
    ea = jnp.zeros((AH, SLAB_COLS), f32)
    ea = ea.at[:, 0:H].set(params["end_W0"][0:A].reshape(AH, H).astype(f32))
    for i in range(A):
        h = B_LAYERS + i                                   # head index of aux branch i
        ea = ea.at[i * H:(i + 1) * H, H + 2 * h:H + 2 * h + 2].set(
            params["aux_out_W"][i].astype(f32))

    def slot(w, h):  # (H,2) head weights -> (H,16) landing in its own lane pair
        return jnp.zeros((H, NH), f32).at[:, 2 * h:2 * h + 2].set(w.astype(f32))

    ea = ea.at[0:H, 48:64].set(slot(params["base_out_W"][0], 0))
    ea = ea.at[0:H, 64:80].set(slot(params["base_out_W"][1], 1))
    ea = ea.at[0:H, 80:96].set(slot(params["end_out_W"][0], NUM_LAYERS - 3))
    ea = ea.at[0:H, 96:112].set(slot(params["end_out_W"][1], NUM_LAYERS - 2))
    ea = ea.at[0:H, 112:128].set(slot(params["mid_out_W"], NUM_LAYERS - 1))
    swap = jnp.zeros((NH, NH), f32)
    for r in range(NUM_LAYERS):
        swap = swap.at[2 * r, 2 * r + 1].set(1.0)
        swap = swap.at[2 * r + 1, 2 * r].set(1.0)
    ea = ea.at[H:H + NH, 48:64].set(swap)
    P = P.at[R_EA:R_EA + AH, :].set(ea)

    # PLACE: identity into lanes 0:16, head row-sums (ensemble logit) into 16:18.
    place = jnp.zeros((NH, SLAB_COLS), f32)
    place = place.at[jnp.arange(NH), jnp.arange(NH)].set(1.0)
    for r in range(NUM_LAYERS):
        place = place.at[2 * r, NH].set(1.0)
        place = place.at[2 * r + 1, NH + 1].set(1.0)
    P = P.at[R_PLACE:R_PLACE + NH, :].set(place)

    # Biases that are not folded via the constant input lane.
    brow = jnp.zeros((SLAB_COLS,), f32)
    brow = brow.at[0:H].set(params["base_b1"].reshape(H).astype(f32))
    brow = brow.at[H:2 * H].set(params["mid_b"].reshape(H).astype(f32))
    brow = brow.at[2 * H:3 * H].set(params["end_b0"].reshape(H).astype(f32))
    brow = brow.at[3 * H:4 * H].set(params["end_b1"].reshape(H).astype(f32))
    P = P.at[R_BIAS, :].set(brow)
    hb = jnp.zeros((NH,), f32)
    hb = hb.at[0:2].set(params["base_out_b"][0].astype(f32))
    hb = hb.at[2:4].set(params["base_out_b"][1].astype(f32))
    for i in range(A):
        hb = hb.at[4 + 2 * i:6 + 2 * i].set(params["aux_out_b"][i].astype(f32))
    hb = hb.at[10:12].set(params["end_out_b"][0].astype(f32))
    hb = hb.at[12:14].set(params["end_out_b"][1].astype(f32))
    hb = hb.at[14:16].set(params["mid_out_b"].reshape(OD).astype(f32))
    P = P.at[R_BIAS + 1, 0:NH].set(hb)
    return P


def pack_inputs(X, X_mask, base_feature, padded_batch):
    """Pack per-call batched inputs into one (padded_batch, 16) lane slab."""
    f32 = jnp.float32
    B = base_feature.shape[0]
    inp = jnp.zeros((padded_batch, IN_LANES), f32)
    inp = inp.at[:, L_ONE].set(1.0)       # constant lane (also keeps padded rows finite)
    inp = inp.at[:B, L_BF:L_BF + IN_DIM].set(base_feature.astype(f32))
    inp = inp.at[:B, L_X:L_X + A_LAYERS].set(X.astype(f32))
    inp = inp.at[:B, L_M:L_M + A_LAYERS].set(X_mask.astype(f32))
    return inp


def _round_up(x, m):
    return (x + m - 1) // m * m


@functools.partial(jax.jit, static_argnames=("tile",))
def auxnet_forward(param_slab, X, X_mask, base_feature, *, tile=128):
    """Batched AuxNet forward: returns (logit (B,2), logits (B,8,2))."""
    B = base_feature.shape[0]
    tile = _round_up(min(tile, _round_up(B, 8)), 8)
    padded = _round_up(B, tile)
    inp = pack_inputs(X, X_mask, base_feature, padded)

    out = pl.pallas_call(
        auxnet_kernel,
        out_shape=jax.ShapeDtypeStruct((padded, OUT_LANES), jnp.float32),
        grid_spec=pltpu.PrefetchScalarGridSpec(
            num_scalar_prefetch=0,
            grid=(padded // tile,),
            in_specs=[
                pl.BlockSpec((SLAB_ROWS, SLAB_COLS), lambda i: (0, 0)),
                pl.BlockSpec((tile, IN_LANES), lambda i: (i, 0)),
            ],
            out_specs=pl.BlockSpec((tile, OUT_LANES), lambda i: (i, 0)),
        ),
        compiler_params=pltpu.CompilerParams(
            dimension_semantics=("parallel",)),
    )(param_slab, inp)

    logits = out[:B, 0:NH].reshape(B, NUM_LAYERS, OUT_DIM)
    logit = out[:B, NH:NH + OUT_DIM]
    return logit, logits


# ---------------------------------------------------------------------------
# Plain-JAX reference (dense-masked math on the ORIGINAL unpacked params)
# ---------------------------------------------------------------------------
def auxnet_reference(params, X, X_mask, base_feature):
    f32 = jnp.float32
    dot = lambda a, b: jnp.dot(a, b, preferred_element_type=f32)
    softmax = lambda z: jax.nn.softmax(z, axis=-1)
    xaux = X.reshape(A_LAYERS, 1).astype(f32)
    mask = X_mask.reshape(A_LAYERS, 1).astype(f32)
    lw = params["layer_weights"].reshape(NUM_LAYERS, 1)

    row_mask = jnp.concatenate(
        [jnp.ones((B_LAYERS, 1), f32), mask, jnp.ones((E_LAYERS + 1, 1), f32)], 0)
    w = lw * row_mask
    w = w / jnp.sum(w)

    rows = []
    x = base_feature.reshape(1, IN_DIM).astype(f32)
    h = jax.nn.relu(dot(x, params["base_W0"]) + params["base_b0"])
    rows.append(softmax(dot(h, params["base_out_W"][0]) + params["base_out_b"][0:1]))
    h = jax.nn.relu(dot(h, params["base_W1"]) + params["base_b1"])
    rows.append(softmax(dot(h, params["base_out_W"][1]) + params["base_out_b"][1:2]))

    middle = jax.nn.relu(dot(h, params["mid_W"]) + params["mid_b"])
    middle_out = softmax(dot(middle, params["mid_out_W"]) + params["mid_out_b"])

    aux_h = jax.nn.relu(xaux * params["aux_W"] + params["aux_b"])
    for i in range(A_LAYERS):
        rows.append(softmax(dot(aux_h[i:i + 1], params["aux_out_W"][i])
                            + params["aux_out_b"][i:i + 1]))

    gamma = jnp.concatenate(
        [lw[B_LAYERS:B_LAYERS + A_LAYERS], lw[NUM_LAYERS - 1:NUM_LAYERS]], 0)
    gamma_mask = jnp.concatenate([mask, jnp.ones((1, 1), f32)], 0)
    gamma = gamma * gamma_mask
    gamma = gamma / jnp.sum(gamma)
    end_input = jnp.concatenate([aux_h * mask, middle], 0) * gamma

    acc = jnp.zeros((1, HIDDEN), f32)
    for r in range(A_LAYERS + 1):
        acc = acc + dot(end_input[r:r + 1], params["end_W0"][r])
    x = jax.nn.relu(acc + params["end_b0"])
    rows.append(softmax(dot(x, params["end_out_W"][0]) + params["end_out_b"][0:1]))
    x = jax.nn.relu(dot(x, params["end_W1"]) + params["end_b1"])
    rows.append(softmax(dot(x, params["end_out_W"][1]) + params["end_out_b"][1:2]))
    rows.append(middle_out)

    logits = jnp.concatenate(rows, 0) * w
    return jnp.sum(logits, axis=0), logits


def init_params(key):
    ks = iter(jax.random.split(key, 32))
    n = lambda shape, s=0.1: (s * jax.random.normal(next(ks), shape)).astype(jnp.float32)
    return {
        "layer_weights": jnp.full((NUM_LAYERS,), 1.0 / NUM_LAYERS, jnp.float32),
        "base_W0": n((IN_DIM, HIDDEN)),
        "base_b0": n((1, HIDDEN)),
        "base_W1": n((HIDDEN, HIDDEN)),
        "base_b1": n((1, HIDDEN)),
        "base_out_W": n((B_LAYERS, HIDDEN, OUT_DIM)),
        "base_out_b": n((B_LAYERS, OUT_DIM)),
        "mid_W": n((HIDDEN, HIDDEN)),
        "mid_b": n((1, HIDDEN)),
        "mid_out_W": n((HIDDEN, OUT_DIM)),
        "mid_out_b": n((1, OUT_DIM)),
        "aux_W": n((A_LAYERS, HIDDEN)),               # Linear(1, H) per aux feature
        "aux_b": n((A_LAYERS, HIDDEN)),
        "aux_out_W": n((A_LAYERS, HIDDEN, OUT_DIM)),
        "aux_out_b": n((A_LAYERS, OUT_DIM)),
        "end_W0": n((A_LAYERS + 1, HIDDEN, HIDDEN)),  # Linear((A+1)*H, H) per block
        "end_b0": n((1, HIDDEN)),
        "end_W1": n((HIDDEN, HIDDEN)),
        "end_b1": n((1, HIDDEN)),
        "end_out_W": n((E_LAYERS, HIDDEN, OUT_DIM)),
        "end_out_b": n((E_LAYERS, OUT_DIM)),
    }


if __name__ == "__main__":
    key = jax.random.PRNGKey(0)
    pkey, xkey, mkey, fkey = jax.random.split(key, 4)
    params = init_params(pkey)
    param_slab = pack_params(params)

    B = 16                                                       # small demo batch
    base_feature = jax.random.normal(fkey, (B, IN_DIM), jnp.float32)
    X = jax.random.normal(xkey, (B, A_LAYERS), jnp.float32)      # aux scalar features
    X_mask = jax.random.bernoulli(mkey, 0.7, (B, A_LAYERS)).astype(jnp.float32)
    X_mask = X_mask.at[1].set(0.0)                               # exercise the all-absent case

    # tile=8 -> grid of 2 batch tiles, exercising the pipelined/parallel grid path.
    logit, logits = auxnet_forward(param_slab, X, X_mask, base_feature, tile=8)
    jax.block_until_ready((logit, logits))

    ref_logit, ref_logits = jax.vmap(
        lambda x, m, bf: auxnet_reference(params, x, m, bf))(X, X_mask, base_feature)

    assert jnp.allclose(logit, ref_logit, atol=1e-3, rtol=1e-3), "logit mismatch"
    assert jnp.allclose(logits, ref_logits, atol=1e-3, rtol=1e-3), "logits mismatch"

    print("KERNEL_OK")
</pallas_src>

<mosaic_0001>
module attributes {stable_mosaic.version = 11 : i64} {
  func.func @auxnet_kernel(%arg0: i32, %arg1: memref<184x128xf32, #tpu.memory_space<vmem>>, %arg2: memref<8x16xf32, #tpu.memory_space<vmem>>, %arg3: memref<8x128xf32, #tpu.memory_space<vmem>>) attributes {dimension_semantics = [#tpu.dimension_semantics<parallel>], iteration_bounds = array<i64: 2>, scalar_prefetch = 0 : i64, scratch_operands = 0 : i64, tpu.core_type = #tpu.core_type<tc>, window_params = [{pipeline_mode = #tpu.pipeline_mode<synchronous>, transform_indices = @transform_0, window_bounds = array<i64: 184, 128>}, {transform_indices = @transform_1, window_bounds = array<i64: 8, 16>}, {transform_indices = @transform_2, window_bounds = array<i64: 8, 128>}]} {
    %c0 = arith.constant 0 : index
    %c0_0 = arith.constant 0 : index
    %0 = vector.load %arg2[%c0, %c0_0] : memref<8x16xf32, #tpu.memory_space<vmem>>, vector<8x16xf32>
    %c0_1 = arith.constant 0 : index
    %c0_2 = arith.constant 0 : index
    %1 = vector.load %arg1[%c0_1, %c0_2] : memref<184x128xf32, #tpu.memory_space<vmem>>, vector<16x128xf32>
    %c16 = arith.constant 16 : index
    %c0_3 = arith.constant 0 : index
    %2 = vector.load %arg1[%c16, %c0_3] : memref<184x128xf32, #tpu.memory_space<vmem>>, vector<16x128xf32>
    %c32 = arith.constant 32 : index
    %c0_4 = arith.constant 0 : index
    %3 = vector.load %arg1[%c32, %c0_4] : memref<184x128xf32, #tpu.memory_space<vmem>>, vector<32x128xf32>
    %c64 = arith.constant 64 : index
    %c0_5 = arith.constant 0 : index
    %4 = vector.load %arg1[%c64, %c0_5] : memref<184x128xf32, #tpu.memory_space<vmem>>, vector<96x32xf32>
    %c64_6 = arith.constant 64 : index
    %c32_7 = arith.constant 32 : index
    %5 = vector.load %arg1[%c64_6, %c32_7] : memref<184x128xf32, #tpu.memory_space<vmem>>, vector<96x16xf32>
    %c64_8 = arith.constant 64 : index
    %c48 = arith.constant 48 : index
    %6 = vector.load %arg1[%c64_8, %c48] : memref<184x128xf32, #tpu.memory_space<vmem>>, vector<32x16xf32>
    %c64_9 = arith.constant 64 : index
    %c64_10 = arith.constant 64 : index
    %7 = vector.load %arg1[%c64_9, %c64_10] : memref<184x128xf32, #tpu.memory_space<vmem>>, vector<32x16xf32>
    %c64_11 = arith.constant 64 : index
    %c80 = arith.constant 80 : index
    %8 = vector.load %arg1[%c64_11, %c80] : memref<184x128xf32, #tpu.memory_space<vmem>>, vector<32x16xf32>
    %c64_12 = arith.constant 64 : index
    %c96 = arith.constant 96 : index
    %9 = vector.load %arg1[%c64_12, %c96] : memref<184x128xf32, #tpu.memory_space<vmem>>, vector<32x16xf32>
    %c64_13 = arith.constant 64 : index
    %c112 = arith.constant 112 : index
    %10 = vector.load %arg1[%c64_13, %c112] : memref<184x128xf32, #tpu.memory_space<vmem>>, vector<32x16xf32>
    %c96_14 = arith.constant 96 : index
    %c48_15 = arith.constant 48 : index
    %11 = vector.load %arg1[%c96_14, %c48_15] : memref<184x128xf32, #tpu.memory_space<vmem>>, vector<16x16xf32>
    %c160 = arith.constant 160 : index
    %c0_16 = arith.constant 0 : index
    %12 = vector.load %arg1[%c160, %c0_16] : memref<184x128xf32, #tpu.memory_space<vmem>>, vector<16x128xf32>
    %c176 = arith.constant 176 : index
    %c0_17 = arith.constant 0 : index
    %13 = vector.load %arg1[%c176, %c0_17] : memref<184x128xf32, #tpu.memory_space<vmem>>, vector<1x128xf32>
    %c177 = arith.constant 177 : index
    %c0_18 = arith.constant 0 : index
    %14 = vector.load %arg1[%c177, %c0_18] : memref<184x128xf32, #tpu.memory_space<vmem>>, vector<1x16xf32>
    %15 = vector.extract_strided_slice %13 {offsets = [0, 0], sizes = [1, 32], strides = [1, 1]} : vector<1x128xf32> to vector<1x32xf32>
    %16 = vector.extract_strided_slice %13 {offsets = [0, 32], sizes = [1, 32], strides = [1, 1]} : vector<1x128xf32> to vector<1x32xf32>
    %17 = vector.extract_strided_slice %13 {offsets = [0, 64], sizes = [1, 32], strides = [1, 1]} : vector<1x128xf32> to vector<1x32xf32>
    %18 = vector.extract_strided_slice %13 {offsets = [0, 96], sizes = [1, 32], strides = [1, 1]} : vector<1x128xf32> to vector<1x32xf32>
    %cst = arith.constant dense<0.000000e+00> : vector<8x128xf32>
    %19 = tpu.matmul %0, %1, %cst {dimension_numbers = #tpu.dot_dimension_numbers<[1], [0], [0], [1], [0, 0, 1, 1], [], []>} : vector<8x16xf32>, vector<16x128xf32>, vector<8x128xf32> -> vector<8x128xf32>
    %cst_19 = arith.constant 0.000000e+00 : f32
    %20 = vector.broadcast %cst_19 : f32 to vector<8x128xf32>
    %21 = arith.maximumf %19, %20 : vector<8x128xf32>
    %22 = vector.extract_strided_slice %21 {offsets = [0, 0], sizes = [8, 96], strides = [1, 1]} : vector<8x128xf32> to vector<8x96xf32>
    %23 = vector.extract_strided_slice %21 {offsets = [0, 96], sizes = [8, 32], strides = [1, 1]} : vector<8x128xf32> to vector<8x32xf32>
    %cst_20 = arith.constant dense<0.000000e+00> : vector<8x128xf32>
    %24 = tpu.matmul %0, %2, %cst_20 {dimension_numbers = #tpu.dot_dimension_numbers<[1], [0], [0], [1], [0, 0, 1, 1], [], []>} : vector<8x16xf32>, vector<16x128xf32>, vector<8x128xf32> -> vector<8x128xf32>
    %25 = vector.extract_strided_slice %24 {offsets = [0, 96], sizes = [8, 1], strides = [1, 1]} : vector<8x128xf32> to vector<8x1xf32>
    %cst_21 = arith.constant 1.000000e+00 : f32
    %26 = vector.broadcast %cst_21 : f32 to vector<8x1xf32>
    %27 = arith.divf %26, %25 : vector<8x1xf32>
    %28 = vector.extract_strided_slice %24 {offsets = [0, 0], sizes = [8, 96], strides = [1, 1]} : vector<8x128xf32> to vector<8x96xf32>
    %29 = vector.broadcast %27 : vector<8x1xf32> to vector<8x96xf32>
    %30 = arith.mulf %28, %29 : vector<8x96xf32>
    %31 = vector.extract_strided_slice %24 {offsets = [0, 97], sizes = [8, 1], strides = [1, 1]} : vector<8x128xf32> to vector<8x1xf32>
    %32 = arith.mulf %31, %27 : vector<8x1xf32>
    %33 = vector.extract_strided_slice %24 {offsets = [0, 112], sizes = [8, 16], strides = [1, 1]} : vector<8x128xf32> to vector<8x16xf32>
    %34 = vector.extract_strided_slice %24 {offsets = [0, 98], sizes = [8, 1], strides = [1, 1]} : vector<8x128xf32> to vector<8x1xf32>
    %cst_22 = arith.constant 1.000000e+00 : f32
    %35 = vector.broadcast %cst_22 : f32 to vector<8x1xf32>
    %36 = arith.divf %35, %34 : vector<8x1xf32>
    %37 = vector.broadcast %36 : vector<8x1xf32> to vector<8x16xf32>
    %38 = arith.mulf %33, %37 : vector<8x16xf32>
    %39 = vector.extract_strided_slice %3 {offsets = [0, 0], sizes = [32, 32], strides = [1, 1]} : vector<32x128xf32> to vector<32x32xf32>
    %cst_23 = arith.constant dense<0.000000e+00> : vector<8x32xf32>
    %40 = tpu.matmul %23, %39, %cst_23 {dimension_numbers = #tpu.dot_dimension_numbers<[1], [0], [0], [1], [0, 0, 1, 1], [], []>} : vector<8x32xf32>, vector<32x32xf32>, vector<8x32xf32> -> vector<8x32xf32>
    %41 = vector.broadcast %15 : vector<1x32xf32> to vector<8x32xf32>
    %42 = arith.addf %40, %41 : vector<8x32xf32>
    %cst_24 = arith.constant 0.000000e+00 : f32
    %43 = vector.broadcast %cst_24 : f32 to vector<8x32xf32>
    %44 = arith.maximumf %42, %43 : vector<8x32xf32>
    %45 = vector.extract_strided_slice %3 {offsets = [0, 32], sizes = [32, 32], strides = [1, 1]} : vector<32x128xf32> to vector<32x32xf32>
    %cst_25 = arith.constant dense<0.000000e+00> : vector<8x32xf32>
    %46 = tpu.matmul %44, %45, %cst_25 {dimension_numbers = #tpu.dot_dimension_numbers<[1], [0], [0], [1], [0, 0, 1, 1], [], []>} : vector<8x32xf32>, vector<32x32xf32>, vector<8x32xf32> -> vector<8x32xf32>
    %47 = vector.broadcast %16 : vector<1x32xf32> to vector<8x32xf32>
    %48 = arith.addf %46, %47 : vector<8x32xf32>
    %cst_26 = arith.constant 0.000000e+00 : f32
    %49 = vector.broadcast %cst_26 : f32 to vector<8x32xf32>
    %50 = arith.maximumf %48, %49 : vector<8x32xf32>
    %51 = arith.mulf %22, %30 : vector<8x96xf32>
    %cst_27 = arith.constant dense<0.000000e+00> : vector<8x32xf32>
    %52 = tpu.matmul %51, %4, %cst_27 {dimension_numbers = #tpu.dot_dimension_numbers<[1], [0], [0], [1], [0, 0, 1, 1], [], []>} : vector<8x96xf32>, vector<96x32xf32>, vector<8x32xf32> -> vector<8x32xf32>
    %53 = vector.broadcast %32 : vector<8x1xf32> to vector<8x32xf32>
    %54 = arith.mulf %50, %53 : vector<8x32xf32>
    %55 = vector.extract_strided_slice %3 {offsets = [0, 96], sizes = [32, 32], strides = [1, 1]} : vector<32x128xf32> to vector<32x32xf32>
    %cst_28 = arith.constant dense<0.000000e+00> : vector<8x32xf32>
    %56 = tpu.matmul %54, %55, %cst_28 {dimension_numbers = #tpu.dot_dimension_numbers<[1], [0], [0], [1], [0, 0, 1, 1], [], []>} : vector<8x32xf32>, vector<32x32xf32>, vector<8x32xf32> -> vector<8x32xf32>
    %57 = arith.addf %52, %56 : vector<8x32xf32>
    %58 = vector.broadcast %17 : vector<1x32xf32> to vector<8x32xf32>
    %59 = arith.addf %57, %58 : vector<8x32xf32>
    %cst_29 = arith.constant 0.000000e+00 : f32
    %60 = vector.broadcast %cst_29 : f32 to vector<8x32xf32>
    %61 = arith.maximumf %59, %60 : vector<8x32xf32>
    %62 = vector.extract_strided_slice %3 {offsets = [0, 64], sizes = [32, 32], strides = [1, 1]} : vector<32x128xf32> to vector<32x32xf32>
    %cst_30 = arith.constant dense<0.000000e+00> : vector<8x32xf32>
    %63 = tpu.matmul %61, %62, %cst_30 {dimension_numbers = #tpu.dot_dimension_numbers<[1], [0], [0], [1], [0, 0, 1, 1], [], []>} : vector<8x32xf32>, vector<32x32xf32>, vector<8x32xf32> -> vector<8x32xf32>
    %64 = vector.broadcast %18 : vector<1x32xf32> to vector<8x32xf32>
    %65 = arith.addf %63, %64 : vector<8x32xf32>
    %cst_31 = arith.constant 0.000000e+00 : f32
    %66 = vector.broadcast %cst_31 : f32 to vector<8x32xf32>
    %67 = arith.maximumf %65, %66 : vector<8x32xf32>
    %cst_32 = arith.constant dense<0.000000e+00> : vector<8x16xf32>
    %68 = tpu.matmul %23, %6, %cst_32 {dimension_numbers = #tpu.dot_dimension_numbers<[1], [0], [0], [1], [0, 0, 1, 1], [], []>} : vector<8x32xf32>, vector<32x16xf32>, vector<8x16xf32> -> vector<8x16xf32>
    %cst_33 = arith.constant dense<0.000000e+00> : vector<8x16xf32>
    %69 = tpu.matmul %44, %7, %cst_33 {dimension_numbers = #tpu.dot_dimension_numbers<[1], [0], [0], [1], [0, 0, 1, 1], [], []>} : vector<8x32xf32>, vector<32x16xf32>, vector<8x16xf32> -> vector<8x16xf32>
    %70 = arith.addf %68, %69 : vector<8x16xf32>
    %cst_34 = arith.constant dense<0.000000e+00> : vector<8x16xf32>
    %71 = tpu.matmul %22, %5, %cst_34 {dimension_numbers = #tpu.dot_dimension_numbers<[1], [0], [0], [1], [0, 0, 1, 1], [], []>} : vector<8x96xf32>, vector<96x16xf32>, vector<8x16xf32> -> vector<8x16xf32>
    %72 = arith.addf %70, %71 : vector<8x16xf32>
    %cst_35 = arith.constant dense<0.000000e+00> : vector<8x16xf32>
    %73 = tpu.matmul %61, %8, %cst_35 {dimension_numbers = #tpu.dot_dimension_numbers<[1], [0], [0], [1], [0, 0, 1, 1], [], []>} : vector<8x32xf32>, vector<32x16xf32>, vector<8x16xf32> -> vector<8x16xf32>
    %74 = arith.addf %72, %73 : vector<8x16xf32>
    %cst_36 = arith.constant dense<0.000000e+00> : vector<8x16xf32>
    %75 = tpu.matmul %67, %9, %cst_36 {dimension_numbers = #tpu.dot_dimension_numbers<[1], [0], [0], [1], [0, 0, 1, 1], [], []>} : vector<8x32xf32>, vector<32x16xf32>, vector<8x16xf32> -> vector<8x16xf32>
    %76 = arith.addf %74, %75 : vector<8x16xf32>
    %cst_37 = arith.constant dense<0.000000e+00> : vector<8x16xf32>
    %77 = tpu.matmul %50, %10, %cst_37 {dimension_numbers = #tpu.dot_dimension_numbers<[1], [0], [0], [1], [0, 0, 1, 1], [], []>} : vector<8x32xf32>, vector<32x16xf32>, vector<8x16xf32> -> vector<8x16xf32>
    %78 = arith.addf %76, %77 : vector<8x16xf32>
    %79 = vector.broadcast %14 : vector<1x16xf32> to vector<8x16xf32>
    %80 = arith.addf %78, %79 : vector<8x16xf32>
    %cst_38 = arith.constant dense<0.000000e+00> : vector<8x16xf32>
    %81 = tpu.matmul %80, %11, %cst_38 {dimension_numbers = #tpu.dot_dimension_numbers<[1], [0], [0], [1], [0, 0, 1, 1], [], []>} : vector<8x16xf32>, vector<16x16xf32>, vector<8x16xf32> -> vector<8x16xf32>
    %82 = arith.subf %81, %80 : vector<8x16xf32>
    %83 = math.exp %82 : vector<8x16xf32>
    %cst_39 = arith.constant 1.000000e+00 : f32
    %84 = vector.broadcast %cst_39 : f32 to vector<8x16xf32>
    %85 = arith.addf %84, %83 : vector<8x16xf32>
    %cst_40 = arith.constant 1.000000e+00 : f32
    %86 = vector.broadcast %cst_40 : f32 to vector<8x16xf32>
    %87 = arith.divf %86, %85 : vector<8x16xf32>
    %88 = arith.mulf %87, %38 : vector<8x16xf32>
    %cst_41 = arith.constant dense<0.000000e+00> : vector<8x128xf32>
    %89 = tpu.matmul %88, %12, %cst_41 {dimension_numbers = #tpu.dot_dimension_numbers<[1], [0], [0], [1], [0, 0, 1, 1], [], []>} : vector<8x16xf32>, vector<16x128xf32>, vector<8x128xf32> -> vector<8x128xf32>
    %c0_42 = arith.constant 0 : index
    %c0_43 = arith.constant 0 : index
    %90 = vector.load %arg3[%c0_42, %c0_43] : memref<8x128xf32, #tpu.memory_space<vmem>>, vector<8x128xf32>
    tpu.vector_store %arg3[%c0_42, %c0_43], %89 {strides = array<i32>} : memref<8x128xf32, #tpu.memory_space<vmem>>, vector<8x128xf32>,
    return
  }
  func.func @transform_0(%arg0: i32) -> (i32, i32) {
    %c0_i32 = arith.constant 0 : i32
    %c0_i32_0 = arith.constant 0 : i32
    %c0_i32_1 = arith.constant 0 : i32
    return %c0_i32, %c0_i32_0 : i32, i32
  }
  func.func @transform_1(%arg0: i32) -> (i32, i32) {
    %c0_i32 = arith.constant 0 : i32
    %c0_i32_0 = arith.constant 0 : i32
    return %arg0, %c0_i32 : i32, i32
  }
  func.func @transform_2(%arg0: i32) -> (i32, i32) {
    %c0_i32 = arith.constant 0 : i32
    %c0_i32_0 = arith.constant 0 : i32
    return %arg0, %c0_i32 : i32, i32
  }
}

</mosaic_0001>

<llo_original>
// kernel: auxnet_forward.1
$region0: #{auxnet_forward.1}
  #allocation0 [shape = 'u32[]', space=smem, size = 0x4, offset = 0x4, fixed_abs, tag = 'smem constant byte address 0x4 - core index']
  #allocation1 [shape = 'u32[144,128]{1,0:T(1,128)}', space=vmem, size = 0x12000, scoped, tag = 'internal scratch']
  %s0 = inlined_call_operand.vmem [shape: f32[184,128], index: 0, kind: input, shape index: {}]
  %s1 = inlined_call_operand.vmem [shape: f32[16,16], index: 1, kind: input, shape index: {}]
  %s2 = inlined_call_operand.vmem [shape: f32[16,128], index: 2, kind: output, shape index: {}]
  %s3 = sld [smem:[#allocation0]]
  $region41: #{auxnet_forward.1} parent=0
    _
  %s5 = ssub.s32 1, %s3
  %s6 = scalar_select 0, %s5, %s3
  loop: start=0, step=1, limit=4
  $region2: #{auxnet_forward.1} parent=0 // loop_pre_header
    _
  $region3: #{auxnet_forward.1} parent=0 // loop_header
    %s8 = sphi 0, %s12
    %p9 = scmp.ge.s32.totalorder %s8, 4
    %s16 = sphi 0, %s16
    %s18 = sphi 0, %s16
    %s19 = sphi 0, %s18
    %s33 = sphi 0, %s19
    %s39 = sphi 0, %s41
    %s42 = sphi 0, %s39
    %s43 = sphi 0, %s42
    %s59 = sphi 0, %s43
    %s65 = sphi 0, %s67
    %s68 = sphi 0, %s65
    %s69 = sphi 0, %s68
    %s85 = sphi 0, %s69
  $region4: #{auxnet_forward.1} parent=0 // loop_header_branch
    %11 = sbr.rel (%p9) target = $region8
  $region5: #{auxnet_forward.1} parent=0 // loop_body
    %s13 = ssub.s32 %s8, 1
    %s14 = ssub.s32 %s8, 2
    %s15 = sadd.s32 %s8, 1
    %s17 = sadd.s32 %s16, 1
    %p20 = scmp.eq.s32.totalorder %s8, 1
    %p21 = scmp.ne.s32.totalorder %s16, %s18
    %p22 = scmp.eq.s32.totalorder %s8, 0
    %p23 = por %p21, %p22
    %p24 = scmp.ne.s32.totalorder %s16, %s18
    %p25 = scmp.eq.s32.totalorder %s13, 1
    %p26 = por %p24, %p25
    %p27 = scmp.ne.s32.totalorder %s18, %s19
    %p28 = scmp.eq.s32.totalorder %s13, 0
    %p29 = por %p27, %p28
    %p30 = scmp.ne.s32.totalorder %s18, %s19
    %p31 = scmp.eq.s32.totalorder %s14, 1
    %p32 = por %p30, %p31
    %p34 = scmp.ne.s32.totalorder %s19, %s33
    %p35 = scmp.eq.s32.totalorder %s14, 0
    %p36 = por %p34, %p35
    %s37 = ssub.s32 %s8, %s15
    %p38 = scmp.eq.s32.totalorder %s37, 0
    %s40 = sadd.s32 %s39, 1
    %s41 = scalar_select %p38, %s39, %s40
    %p44 = pneg %p38
    %p45 = scmp.eq.s32.totalorder %s8, 1
    %p46 = por %p44, %p45
    %p47 = scmp.ne.s32.totalorder %s39, %s42
    %p48 = scmp.eq.s32.totalorder %s8, 0
    %p49 = por %p47, %p48
    %p50 = scmp.ne.s32.totalorder %s39, %s42
    %p51 = scmp.eq.s32.totalorder %s13, 1
    %p52 = por %p50, %p51
    %p53 = scmp.ne.s32.totalorder %s42, %s43
    %p54 = scmp.eq.s32.totalorder %s13, 0
    %p55 = por %p53, %p54
    %p56 = scmp.ne.s32.totalorder %s42, %s43
    %p57 = scmp.eq.s32.totalorder %s14, 1
    %p58 = por %p56, %p57
    %p60 = scmp.ne.s32.totalorder %s43, %s59
    %p61 = scmp.eq.s32.totalorder %s14, 0
    %p62 = por %p60, %p61
    %s63 = ssub.s32 %s8, %s15
    %p64 = scmp.eq.s32.totalorder %s63, 0
    %s66 = sadd.s32 %s65, 1
    %s67 = scalar_select %p64, %s65, %s66
    %p70 = pneg %p64
    %p71 = scmp.eq.s32.totalorder %s8, 1
    %p72 = por %p70, %p71
    %p73 = scmp.ne.s32.totalorder %s65, %s68
    %p74 = scmp.eq.s32.totalorder %s8, 0
    %p75 = por %p73, %p74
    %p76 = scmp.ne.s32.totalorder %s65, %s68
    %p77 = scmp.eq.s32.totalorder %s13, 1
    %p78 = por %p76, %p77
    %p79 = scmp.ne.s32.totalorder %s68, %s69
    %p80 = scmp.eq.s32.totalorder %s13, 0
    %p81 = por %p79, %p80
    %p82 = scmp.ne.s32.totalorder %s68, %s69
    %p83 = scmp.eq.s32.totalorder %s14, 1
    %p84 = por %p82, %p83
    %p86 = scmp.ne.s32.totalorder %s69, %s85
    %p87 = scmp.eq.s32.totalorder %s14, 0
    %p88 = por %p86, %p87
    %p89 = scmp.le.s32.totalorder 1, %s8
    %p90 = scmp.lt.s32.totalorder %s8, 3
    %p91 = pnand %p89, %p90
    %p92 = pneg %p91
    // Predicated region
    $region9: #{auxnet_forward.1} parent=5 // pred_check
      _
    $region10: #{auxnet_forward.1} parent=5 // pred_check_branch
      %94 = sbr.rel (%p91) target = $region12
    $region11: #{auxnet_forward.1} parent=5 // pred_region
      %s95 = ssub.s32 %s8, 1
      // Predicated region
      $region13: #{auxnet_forward.1} parent=11 // pred_check
        %p96 = pneg %p29
      $region14: #{auxnet_forward.1} parent=11 // pred_check_branch
        %98 = sbr.rel (%p96) target = $region16
      $region15: #{auxnet_forward.1} parent=11 // pred_region
        _
      $region16: #{auxnet_forward.1} parent=11 // pred_fallthru
        _
    $region12: #{auxnet_forward.1} parent=5 // pred_fallthru
      _
    %p99 = scmp.lt.s32.totalorder %s8, 2
    // Predicated region
    $region17: #{auxnet_forward.1} parent=5 // pred_check
      %p100 = pneg %p99
    $region18: #{auxnet_forward.1} parent=5 // pred_check_branch
      %102 = sbr.rel (%p100) target = $region20
    $region19: #{auxnet_forward.1} parent=5 // pred_region
      // Predicated region
      $region21: #{auxnet_forward.1} parent=19 // pred_check
        %p103 = pneg %p49
      $region22: #{auxnet_forward.1} parent=19 // pred_check_branch
        %105 = sbr.rel (%p103) target = $region24
      $region23: #{auxnet_forward.1} parent=19 // pred_region
        %p106 = scmp.lt.s32.totalorder %s8, 1
        %s107 = scalar_select %p106, %s8, 1
        %s108 = smul.addr %s107, 8
        %s109 = scalar_lea.vmem %s1, %s108
      $region24: #{auxnet_forward.1} parent=19 // pred_fallthru
        _
    $region20: #{auxnet_forward.1} parent=5 // pred_fallthru
      _
    %p110 = scmp.le.s32.totalorder 1, %s8
    %p111 = scmp.lt.s32.totalorder %s8, 3
    %p112 = pnand %p110, %p111
    %p113 = pneg %p112
    // Predicated region
    $region25: #{auxnet_forward.1} parent=5 // pred_check
      _
    $region26: #{auxnet_forward.1} parent=5 // pred_check_branch
      %115 = sbr.rel (%p112) target = $region28
    $region27: #{auxnet_forward.1} parent=5 // pred_region
      %s116 = ssub.s32 %s8, 1
      %p117 = pneg %p29
      %p118 = pneg %p26
      %p119 = scmp.lt.s32.totalorder %s13, 1
      %s120 = scalar_select %p119, %s13, 1
      %s121 = smul.addr %s120, 8
      %s122 = scalar_lea.vmem %s1, %s121
      %p123 = pneg %p55
      %p124 = pneg %p52
      %p125 = pneg %p81
      %p126 = pneg %p78
      %p127 = scmp.lt.s32.totalorder %s13, 1
      %s128 = scalar_select %p127, %s13, 1
      %s129 = smul.addr %s128, 8
      %s130 = scalar_lea.vmem %s2, %s129
      %p131 = scmp.lt.s32.totalorder %s13, 1
      %s132 = scalar_select %p131, %s13, 1
      %s133 = smul.addr %s132, 8
      %s134 = scalar_lea.vmem %s1, %s133
      %p135 = scmp.lt.s32.totalorder %s13, 1
      %s136 = scalar_select %p135, %s13, 1
      %s137 = smul.addr %s136, 8
      %s138 = scalar_lea.vmem %s2, %s137
      %v139 = vld [vmem:[%s134] sm:$0xff]
      %v140 = vld [vmem:[%s0] sm:$0xff]
      %v141 = vld [vmem:[%s0 + $0x8] sm:$0xff]
      %v142 = vld [vmem:[%s0 + $0x10] sm:$0xff]
      %v143 = vld [vmem:[%s0 + $0x18] sm:$0xff]
      %v144 = vld [vmem:[%s0 + $0x20] sm:$0xff]
      %v145 = vld [vmem:[%s0 + $0x28] sm:$0xff]
      %v146 = vld [vmem:[%s0 + $0x30] sm:$0xff]
      %v147 = vld [vmem:[%s0 + $0x38] sm:$0xff]
      %v148 = vld [vmem:[%s0 + $0x40] sm:$0xff]
      %v149 = vld [vmem:[%s0 + $0x48] sm:$0xff]
      %v150 = vld [vmem:[%s0 + $0x50] sm:$0xff]
      %v151 = vld [vmem:[%s0 + $0x58] sm:$0xff]
      %v152 = vld [vmem:[%s0 + $0x60] sm:$0xff]
      %v153 = vld [vmem:[%s0 + $0x68] sm:$0xff]
      %v154 = vld [vmem:[%s0 + $0x70] sm:$0xff]
      %v155 = vld [vmem:[%s0 + $0x78] sm:$0xff]
      %v156 = vld [vmem:[%s0 + $0x80] sm:$0xff]
      %v157 = vld [vmem:[%s0 + $0x88] sm:$0xff]
      %v158 = vld [vmem:[%s0 + $0x90] sm:$0xff]
      %v159 = vld [vmem:[%s0 + $0x98] sm:$0xff]
      %v160 = vld [vmem:[%s0 + $0xa0] sm:$0xff]
      %v161 = vld [vmem:[%s0 + $0xa8] sm:$0xff]
      %v162 = vld [vmem:[%s0 + $0xb0] sm:$0x1]
      %v163 = vld [vmem:[%s0 + $0xb1] sm:$0x1]
      %vm164 = vcmask 130048
      %v166 = vsel %vm164, %v139, 0
      %168 = vmatprep.subr.mxu0 0.0
      %169 = vmatpush1.msra.mxu0 0.0
      %170 = vmatprep.subr.mxu0 0.0
      %171 = vmatpush1.msra.mxu0 0.0
      %172 = vmatprep.subr.mxu0 0.0
      %173 = vmatpush1.msra.mxu0 0.0
      %174 = vmatprep.subr.mxu0 0.0
      %175 = vmatpush1.msra.mxu0 0.0
      %176 = vmatprep.subr.mxu0 0.0
      %177 = vmatpush1.msra.mxu0 0.0
      %178 = vmatprep.subr.mxu0 0.0
      %179 = vmatpush1.msra.mxu0 0.0
      %180 = vmatprep.subr.mxu0 0.0
      %181 = vmatpush1.msra.mxu0 0.0
      %182 = vmatprep.subr.mxu0 0.0
      %183 = vmatpush1.msra.mxu0 0.0
      %184 = vmatprep.subr.mxu0 0.0
      %185 = vmatpush1.msra.mxu0 0.0
      %186 = vmatprep.subr.mxu0 0.0
      %187 = vmatpush1.msra.mxu0 0.0
      %188 = vmatprep.subr.mxu0 0.0
      %189 = vmatpush1.msra.mxu0 0.0
      %190 = vmatprep.subr.mxu0 0.0
      %191 = vmatpush1.msra.mxu0 0.0
      %192 = vmatprep.subr.mxu0 0.0
      %193 = vmatpush1.msra.mxu0 0.0
      %194 = vmatprep.subr.mxu0 0.0
      %195 = vmatpush1.msra.mxu0 0.0
      %196 = vmatprep.subr.mxu0 0.0
      %197 = vmatpush1.msra.mxu0 %v141
      %198 = vmatprep.subr.mxu0 0.0
      %199 = vmatpush1.msra.mxu0 %v140
      %200 = vmatprep.subr.mxu0 0.0
      %201 = vmatpush2.msra.mxu0 0.0
      %202 = vmatprep.subr.mxu0 0.0
      %203 = vmatpush2.msra.mxu0 0.0
      %204 = vmatprep.subr.mxu0 0.0
      %205 = vmatpush2.msra.mxu0 0.0
      %206 = vmatprep.subr.mxu0 0.0
      %207 = vmatpush2.msra.mxu0 0.0
      %208 = vmatprep.subr.mxu0 0.0
      %209 = vmatpush2.msra.mxu0 0.0
      %210 = vmatprep.subr.mxu0 0.0
      %211 = vmatpush2.msra.mxu0 0.0
      %212 = vmatprep.subr.mxu0 0.0
      %213 = vmatpush2.msra.mxu0 0.0
      %214 = vmatprep.subr.mxu0 0.0
      %215 = vmatpush2.msra.mxu0 0.0
      %216 = vmatprep.subr.mxu0 0.0
      %217 = vmatpush2.msra.mxu0 0.0
      %218 = vmatprep.subr.mxu0 0.0
      %219 = vmatpush2.msra.mxu0 0.0
      %220 = vmatprep.subr.mxu0 0.0
      %221 = vmatpush2.msra.mxu0 0.0
      %222 = vmatprep.subr.mxu0 0.0
      %223 = vmatpush2.msra.mxu0 0.0
      %224 = vmatprep.subr.mxu0 0.0
      %225 = vmatpush2.msra.mxu0 0.0
      %226 = vmatprep.subr.mxu0 0.0
      %227 = vmatpush2.msra.mxu0 0.0
      %228 = vmatprep.subr.mxu0 0.0
      %229 = vmatpush2.msra.mxu0 0.0
      %230 = vmatprep.subr.mxu0 0.0
      %231 = vmatpush2.msra.mxu0 0.0
      %232 = vmatprep.mubr.f32.mxu0 0.0
      %233 = vmatmul.mubr.f32.gmra.mxu0 %v166
      %v234 = vpop.f32.mrf.mxu0
      %v235 = vadd.f32 0.0, %v234
      %v236 = vpop.f32.mrf.mxu0
      %237 = vdwg.mxu0
      %v238 = vmax.f32 %v235, 0.0
      %239 = vmatprep.subr.mxu0 0.0
      %240 = vmatpush1.msra.mxu0 0.0
      %241 = vmatprep.subr.mxu0 0.0
      %242 = vmatpush1.msra.mxu0 0.0
      %243 = vmatprep.subr.mxu0 0.0
      %244 = vmatpush1.msra.mxu0 0.0
      %245 = vmatprep.subr.mxu0 0.0
      %246 = vmatpush1.msra.mxu0 0.0
      %247 = vmatprep.subr.mxu0 0.0
      %248 = vmatpush1.msra.mxu0 0.0
      %249 = vmatprep.subr.mxu0 0.0
      %250 = vmatpush1.msra.mxu0 0.0
      %251 = vmatprep.subr.mxu0 0.0
      %252 = vmatpush1.msra.mxu0 0.0
      %253 = vmatprep.subr.mxu0 0.0
      %254 = vmatpush1.msra.mxu0 0.0
      %255 = vmatprep.subr.mxu0 0.0
      %256 = vmatpush1.msra.mxu0 0.0
      %257 = vmatprep.subr.mxu0 0.0
      %258 = vmatpush1.msra.mxu0 0.0
      %259 = vmatprep.subr.mxu0 0.0
      %260 = vmatpush1.msra.mxu0 0.0
      %261 = vmatprep.subr.mxu0 0.0
      %262 = vmatpush1.msra.mxu0 0.0
      %263 = vmatprep.subr.mxu0 0.0
      %264 = vmatpush1.msra.mxu0 0.0
      %265 = vmatprep.subr.mxu0 0.0
      %266 = vmatpush1.msra.mxu0 0.0
      %267 = vmatprep.subr.mxu0 0.0
      %268 = vmatpush1.msra.mxu0 %v143
      %269 = vmatprep.subr.mxu0 0.0
      %270 = vmatpush1.msra.mxu0 %v142
      %271 = vmatprep.subr.mxu0 0.0
      %272 = vmatpush2.msra.mxu0 0.0
      %273 = vmatprep.subr.mxu0 0.0
      %274 = vmatpush2.msra.mxu0 0.0
      %275 = vmatprep.subr.mxu0 0.0
      %276 = vmatpush2.msra.mxu0 0.0
      %277 = vmatprep.subr.mxu0 0.0
      %278 = vmatpush2.msra.mxu0 0.0
      %279 = vmatprep.subr.mxu0 0.0
      %280 = vmatpush2.msra.mxu0 0.0
      %281 = vmatprep.subr.mxu0 0.0
      %282 = vmatpush2.msra.mxu0 0.0
      %283 = vmatprep.subr.mxu0 0.0
      %284 = vmatpush2.msra.mxu0 0.0
      %285 = vmatprep.subr.mxu0 0.0
      %286 = vmatpush2.msra.mxu0 0.0
      %287 = vmatprep.subr.mxu0 0.0
      %288 = vmatpush2.msra.mxu0 0.0
      %289 = vmatprep.subr.mxu0 0.0
      %290 = vmatpush2.msra.mxu0 0.0
      %291 = vmatprep.subr.mxu0 0.0
      %292 = vmatpush2.msra.mxu0 0.0
      %293 = vmatprep.subr.mxu0 0.0
      %294 = vmatpush2.msra.mxu0 0.0
      %295 = vmatprep.subr.mxu0 0.0
      %296 = vmatpush2.msra.mxu0 0.0
      %297 = vmatprep.subr.mxu0 0.0
      %298 = vmatpush2.msra.mxu0 0.0
      %299 = vmatprep.subr.mxu0 0.0
      %300 = vmatpush2.msra.mxu0 0.0
      %301 = vmatprep.subr.mxu0 0.0
      %302 = vmatpush2.msra.mxu0 0.0
      %303 = vmatprep.mubr.f32.mxu0 0.0
      %304 = vmatmul.mubr.f32.gmra.mxu0 %v166
      %v305 = vpop.f32.mrf.mxu0
      %v306 = vadd.f32 0.0, %v305
      %v307 = vpop.f32.mrf.mxu0
      %308 = vdwg.mxu0
      %v309 = vrcp.pop %v306
      %v310 = vmul.f32 1.0, %v309
      %312 = vset.pattern.permute.xlu0 96
      %313 = vperm.xlu0 %312, %v310
      %v314 = vpop.permute.xlu0 %313
      %v316 = vmul.f32 %v306, %v314
      %317 = vrot.lane.b32.xlu0 %v310, 1
      %v318 = vpop.permute.xlu0 %317
      %v320 = vmul.f32 %v306, %v318
      %321 = vset.pattern.permute.xlu0 98
      %322 = vperm.xlu0 %321, %v310
      %v323 = vpop.permute.xlu0 %322
      %v325 = vmul.f32 %v306, %v323
      %v326 = vlaneseq
      %v327 = vshrl.u32 %v326, 7
      %v328 = vsub.s32 0, %v327
      %v329 = vrot.slane %v162, %v328
      %331 = vrot.lane.b32.xlu0 %v238, 32
      %v332 = vpop.permute.xlu0 %331
      %vm333 = vcmask 261120
      %v334 = vsel %vm333, %v332, 0
      %336 = vmatprep.subr.mxu0 0.0
      %337 = vmatpush1.msra.mxu0 0.0
      %338 = vmatprep.subr.mxu0 0.0
      %339 = vmatpush1.msra.mxu0 0.0
      %340 = vmatprep.subr.mxu0 0.0
      %341 = vmatpush1.msra.mxu0 0.0
      %342 = vmatprep.subr.mxu0 0.0
      %343 = vmatpush1.msra.mxu0 0.0
      %344 = vmatprep.subr.mxu0 0.0
      %345 = vmatpush1.msra.mxu0 0.0
      %346 = vmatprep.subr.mxu0 0.0
      %347 = vmatpush1.msra.mxu0 0.0
      %348 = vmatprep.subr.mxu0 0.0
      %349 = vmatpush1.msra.mxu0 0.0
      %350 = vmatprep.subr.mxu0 0.0
      %351 = vmatpush1.msra.mxu0 0.0
      %352 = vmatprep.subr.mxu0 0.0
      %353 = vmatpush1.msra.mxu0 0.0
      %354 = vmatprep.subr.mxu0 0.0
      %355 = vmatpush1.msra.mxu0 0.0
      %356 = vmatprep.subr.mxu0 0.0
      %357 = vmatpush1.msra.mxu0 0.0
      %358 = vmatprep.subr.mxu0 0.0
      %359 = vmatpush1.msra.mxu0 0.0
      %360 = vmatprep.subr.mxu0 0.0
      %361 = vmatpush1.msra.mxu0 %v147
      %362 = vmatprep.subr.mxu0 0.0
      %363 = vmatpush1.msra.mxu0 %v146
      %364 = vmatprep.subr.mxu0 0.0
      %365 = vmatpush1.msra.mxu0 %v145
      %366 = vmatprep.subr.mxu0 0.0
      %367 = vmatpush1.msra.mxu0 %v144
      %368 = vmatprep.subr.mxu0 0.0
      %369 = vmatpush2.msra.mxu0 0.0
      %370 = vmatprep.subr.mxu0 0.0
      %371 = vmatpush2.msra.mxu0 0.0
      %372 = vmatprep.subr.mxu0 0.0
      %373 = vmatpush2.msra.mxu0 0.0
      %374 = vmatprep.subr.mxu0 0.0
      %375 = vmatpush2.msra.mxu0 0.0
      %376 = vmatprep.subr.mxu0 0.0
      %377 = vmatpush2.msra.mxu0 0.0
      %378 = vmatprep.subr.mxu0 0.0
      %379 = vmatpush2.msra.mxu0 0.0
      %380 = vmatprep.subr.mxu0 0.0
      %381 = vmatpush2.msra.mxu0 0.0
      %382 = vmatprep.subr.mxu0 0.0
      %383 = vmatpush2.msra.mxu0 0.0
      %384 = vmatprep.subr.mxu0 0.0
      %385 = vmatpush2.msra.mxu0 0.0
      %386 = vmatprep.subr.mxu0 0.0
      %387 = vmatpush2.msra.mxu0 0.0
      %388 = vmatprep.subr.mxu0 0.0
      %389 = vmatpush2.msra.mxu0 0.0
      %390 = vmatprep.subr.mxu0 0.0
      %391 = vmatpush2.msra.mxu0 0.0
      %392 = vmatprep.subr.mxu0 0.0
      %393 = vmatpush2.msra.mxu0 0.0
      %394 = vmatprep.subr.mxu0 0.0
      %395 = vmatpush2.msra.mxu0 0.0
      %396 = vmatprep.subr.mxu0 0.0
      %397 = vmatpush2.msra.mxu0 0.0
      %398 = vmatprep.subr.mxu0 0.0
      %399 = vmatpush2.msra.mxu0 0.0
      %400 = vmatprep.mubr.f32.mxu0 0.0
      %401 = vmatmul.mubr.f32.gmra.mxu0 %v334
      %v402 = vpop.f32.mrf.mxu0
      %v403 = vadd.f32 %v329, %v402
      %v404 = vpop.f32.mrf.mxu0
      %405 = vdwg.mxu0
      %v406 = vmax.f32 %v403, 0.0
      %411 = vrot.lane.b32.xlu0 %v144, 96
      %v412 = vpop.permute.xlu0 %411
      %413 = vrot.lane.b32.xlu0 %v145, 96
      %v414 = vpop.permute.xlu0 %413
      %415 = vrot.lane.b32.xlu0 %v146, 96
      %v416 = vpop.permute.xlu0 %415
      %417 = vrot.lane.b32.xlu0 %v147, 96
      %v418 = vpop.permute.xlu0 %417
      %424 = vrot.lane.b32.xlu0 %v329, 96
      %v425 = vpop.permute.xlu0 %424
      %v428 = vsel %vm333, %v406, 0
      %430 = vmatprep.subr.mxu0 0.0
      %431 = vmatpush1.msra.mxu0 0.0
      %432 = vmatprep.subr.mxu0 0.0
      %433 = vmatpush1.msra.mxu0 0.0
      %434 = vmatprep.subr.mxu0 0.0
      %435 = vmatpush1.msra.mxu0 0.0
      %436 = vmatprep.subr.mxu0 0.0
      %437 = vmatpush1.msra.mxu0 0.0
      %438 = vmatprep.subr.mxu0 0.0
      %439 = vmatpush1.msra.mxu0 0.0
      %440 = vmatprep.subr.mxu0 0.0
      %441 = vmatpush1.msra.mxu0 0.0
      %442 = vmatprep.subr.mxu0 0.0
      %443 = vmatpush1.msra.mxu0 0.0
      %444 = vmatprep.subr.mxu0 0.0
      %445 = vmatpush1.msra.mxu0 0.0
      %446 = vmatprep.subr.mxu0 0.0
      %447 = vmatpush1.msra.mxu0 0.0
      %448 = vmatprep.subr.mxu0 0.0
      %449 = vmatpush1.msra.mxu0 0.0
      %450 = vmatprep.subr.mxu0 0.0
      %451 = vmatpush1.msra.mxu0 0.0
      %452 = vmatprep.subr.mxu0 0.0
      %453 = vmatpush1.msra.mxu0 0.0
      %454 = vmatprep.subr.mxu0 0.0
      %455 = vmatpush1.msra.mxu0 %v418
      %456 = vmatprep.subr.mxu0 0.0
      %457 = vmatpush1.msra.mxu0 %v416
      %458 = vmatprep.subr.mxu0 0.0
      %459 = vmatpush1.msra.mxu0 %v414
      %460 = vmatprep.subr.mxu0 0.0
      %461 = vmatpush1.msra.mxu0 %v412
      %462 = vmatprep.subr.mxu0 0.0
      %463 = vmatpush2.msra.mxu0 0.0
      %464 = vmatprep.subr.mxu0 0.0
      %465 = vmatpush2.msra.mxu0 0.0
      %466 = vmatprep.subr.mxu0 0.0
      %467 = vmatpush2.msra.mxu0 0.0
      %468 = vmatprep.subr.mxu0 0.0
      %469 = vmatpush2.msra.mxu0 0.0
      %470 = vmatprep.subr.mxu0 0.0
      %471 = vmatpush2.msra.mxu0 0.0
      %472 = vmatprep.subr.mxu0 0.0
      %473 = vmatpush2.msra.mxu0 0.0
      %474 = vmatprep.subr.mxu0 0.0
      %475 = vmatpush2.msra.mxu0 0.0
      %476 = vmatprep.subr.mxu0 0.0
      %477 = vmatpush2.msra.mxu0 0.0
      %478 = vmatprep.subr.mxu0 0.0
      %479 = vmatpush2.msra.mxu0 0.0
      %480 = vmatprep.subr.mxu0 0.0
      %481 = vmatpush2.msra.mxu0 0.0
      %482 = vmatprep.subr.mxu0 0.0
      %483 = vmatpush2.msra.mxu0 0.0
      %484 = vmatprep.subr.mxu0 0.0
      %485 = vmatpush2.msra.mxu0 0.0
      %486 = vmatprep.subr.mxu0 0.0
      %487 = vmatpush2.msra.mxu0 0.0
      %488 = vmatprep.subr.mxu0 0.0
      %489 = vmatpush2.msra.mxu0 0.0
      %490 = vmatprep.subr.mxu0 0.0
      %491 = vmatpush2.msra.mxu0 0.0
      %492 = vmatprep.subr.mxu0 0.0
      %493 = vmatpush2.msra.mxu0 0.0
      %494 = vmatprep.mubr.f32.mxu0 0.0
      %495 = vmatmul.mubr.f32.gmra.mxu0 %v428
      %v496 = vpop.f32.mrf.mxu0
      %v497 = vadd.f32 %v425, %v496
      %v498 = vpop.f32.mrf.mxu0
      %499 = vdwg.mxu0
      %v500 = vmax.f32 %v497, 0.0
      %v501 = vmul.f32 %v238, %v316
      %503 = vset.pattern.permute.xlu0 97
      %504 = vperm.xlu0 %503, %v320
      %v505 = vpop.permute.xlu0 %504
      %v507 = vmul.f32 %v500, %v505
      %508 = vrot.lane.b32.xlu0 %v144, 32
      %v509 = vpop.permute.xlu0 %508
      %510 = vrot.lane.b32.xlu0 %v145, 32
      %v511 = vpop.permute.xlu0 %510
      %512 = vrot.lane.b32.xlu0 %v146, 32
      %v513 = vpop.permute.xlu0 %512
      %514 = vrot.lane.b32.xlu0 %v147, 32
      %v515 = vpop.permute.xlu0 %514
      %v521 = vsel %vm333, %v507, 0
      %523 = vmatprep.subr.mxu0 0.0
      %524 = vmatpush1.msra.mxu0 0.0
      %525 = vmatprep.subr.mxu0 0.0
      %526 = vmatpush1.msra.mxu0 0.0
      %527 = vmatprep.subr.mxu0 0.0
      %528 = vmatpush1.msra.mxu0 0.0
      %529 = vmatprep.subr.mxu0 0.0
      %530 = vmatpush1.msra.mxu0 0.0
      %531 = vmatprep.subr.mxu0 0.0
      %532 = vmatpush1.msra.mxu0 0.0
      %533 = vmatprep.subr.mxu0 0.0
      %534 = vmatpush1.msra.mxu0 0.0
      %535 = vmatprep.subr.mxu0 0.0
      %536 = vmatpush1.msra.mxu0 0.0
      %537 = vmatprep.subr.mxu0 0.0
      %538 = vmatpush1.msra.mxu0 0.0
      %539 = vmatprep.subr.mxu0 0.0
      %540 = vmatpush1.msra.mxu0 0.0
      %541 = vmatprep.subr.mxu0 0.0
      %542 = vmatpush1.msra.mxu0 0.0
      %543 = vmatprep.subr.mxu0 0.0
      %544 = vmatpush1.msra.mxu0 0.0
      %545 = vmatprep.subr.mxu0 0.0
      %546 = vmatpush1.msra.mxu0 0.0
      %547 = vmatprep.subr.mxu0 0.0
      %548 = vmatpush1.msra.mxu0 %v515
      %549 = vmatprep.subr.mxu0 0.0
      %550 = vmatpush1.msra.mxu0 %v513
      %551 = vmatprep.subr.mxu0 0.0
      %552 = vmatpush1.msra.mxu0 %v511
      %553 = vmatprep.subr.mxu0 0.0
      %554 = vmatpush1.msra.mxu0 %v509
      %555 = vmatprep.subr.mxu0 0.0
      %556 = vmatpush2.msra.mxu0 0.0
      %557 = vmatprep.subr.mxu0 0.0
      %558 = vmatpush2.msra.mxu0 0.0
      %559 = vmatprep.subr.mxu0 0.0
      %560 = vmatpush2.msra.mxu0 0.0
      %561 = vmatprep.subr.mxu0 0.0
      %562 = vmatpush2.msra.mxu0 0.0
      %563 = vmatprep.subr.mxu0 0.0
      %564 = vmatpush2.msra.mxu0 0.0
      %565 = vmatprep.subr.mxu0 0.0
      %566 = vmatpush2.msra.mxu0 0.0
      %567 = vmatprep.subr.mxu0 0.0
      %568 = vmatpush2.msra.mxu0 0.0
      %569 = vmatprep.subr.mxu0 0.0
      %570 = vmatpush2.msra.mxu0 0.0
      %571 = vmatprep.subr.mxu0 0.0
      %572 = vmatpush2.msra.mxu0 0.0
      %573 = vmatprep.subr.mxu0 0.0
      %574 = vmatpush2.msra.mxu0 0.0
      %575 = vmatprep.subr.mxu0 0.0
      %576 = vmatpush2.msra.mxu0 0.0
      %577 = vmatprep.subr.mxu0 0.0
      %578 = vmatpush2.msra.mxu0 0.0
      %579 = vmatprep.subr.mxu0 0.0
      %580 = vmatpush2.msra.mxu0 0.0
      %581 = vmatprep.subr.mxu0 0.0
      %582 = vmatpush2.msra.mxu0 0.0
      %583 = vmatprep.subr.mxu0 0.0
      %584 = vmatpush2.msra.mxu0 0.0
      %585 = vmatprep.subr.mxu0 0.0
      %586 = vmatpush2.msra.mxu0 0.0
      %587 = vmatprep.mubr.f32.mxu0 0.0
      %588 = vmatmul.mubr.f32.gmra.mxu0 %v521
      %v589 = vpop.f32.mrf.mxu0
      %v590 = vadd.f32 0.0, %v589
      %v591 = vpop.f32.mrf.mxu0
      %592 = vdwg.mxu0
      %vm593 = vcmask 785408
      %v595 = vsel %vm593, %v501, 0
      %597 = vmatprep.subr.mxu0 0.0
      %598 = vmatpush1.msra.mxu0 0.0
      %599 = vmatprep.subr.mxu0 0.0
      %600 = vmatpush1.msra.mxu0 0.0
      %601 = vmatprep.subr.mxu0 0.0
      %602 = vmatpush1.msra.mxu0 0.0
      %603 = vmatprep.subr.mxu0 0.0
      %604 = vmatpush1.msra.mxu0 0.0
      %605 = vmatprep.subr.mxu0 0.0
      %606 = vmatpush1.msra.mxu0 %v159
      %607 = vmatprep.subr.mxu0 0.0
      %608 = vmatpush1.msra.mxu0 %v158
      %609 = vmatprep.subr.mxu0 0.0
      %610 = vmatpush1.msra.mxu0 %v157
      %611 = vmatprep.subr.mxu0 0.0
      %612 = vmatpush1.msra.mxu0 %v156
      %613 = vmatprep.subr.mxu0 0.0
      %614 = vmatpush1.msra.mxu0 %v155
      %615 = vmatprep.subr.mxu0 0.0
      %616 = vmatpush1.msra.mxu0 %v154
      %617 = vmatprep.subr.mxu0 0.0
      %618 = vmatpush1.msra.mxu0 %v153
      %619 = vmatprep.subr.mxu0 0.0
      %620 = vmatpush1.msra.mxu0 %v152
      %621 = vmatprep.subr.mxu0 0.0
      %622 = vmatpush1.msra.mxu0 %v151
      %623 = vmatprep.subr.mxu0 0.0
      %624 = vmatpush1.msra.mxu0 %v150
      %625 = vmatprep.subr.mxu0 0.0
      %626 = vmatpush1.msra.mxu0 %v149
      %627 = vmatprep.subr.mxu0 0.0
      %628 = vmatpush1.msra.mxu0 %v148
      %629 = vmatprep.subr.mxu0 0.0
      %630 = vmatpush2.msra.mxu0 0.0
      %631 = vmatprep.subr.mxu0 0.0
      %632 = vmatpush2.msra.mxu0 0.0
      %633 = vmatprep.subr.mxu0 0.0
      %634 = vmatpush2.msra.mxu0 0.0
      %635 = vmatprep.subr.mxu0 0.0
      %636 = vmatpush2.msra.mxu0 0.0
      %637 = vmatprep.subr.mxu0 0.0
      %638 = vmatpush2.msra.mxu0 0.0
      %639 = vmatprep.subr.mxu0 0.0
      %640 = vmatpush2.msra.mxu0 0.0
      %641 = vmatprep.subr.mxu0 0.0
      %642 = vmatpush2.msra.mxu0 0.0
      %643 = vmatprep.subr.mxu0 0.0
      %644 = vmatpush2.msra.mxu0 0.0
      %645 = vmatprep.subr.mxu0 0.0
      %646 = vmatpush2.msra.mxu0 0.0
      %647 = vmatprep.subr.mxu0 0.0
      %648 = vmatpush2.msra.mxu0 0.0
      %649 = vmatprep.subr.mxu0 0.0
      %650 = vmatpush2.msra.mxu0 0.0
      %651 = vmatprep.subr.mxu0 0.0
      %652 = vmatpush2.msra.mxu0 0.0
      %653 = vmatprep.subr.mxu0 0.0
      %654 = vmatpush2.msra.mxu0 0.0
      %655 = vmatprep.subr.mxu0 0.0
      %656 = vmatpush2.msra.mxu0 0.0
      %657 = vmatprep.subr.mxu0 0.0
      %658 = vmatpush2.msra.mxu0 0.0
      %659 = vmatprep.subr.mxu0 0.0
      %660 = vmatpush2.msra.mxu0 0.0
      %661 = vmatprep.mubr.f32.mxu0 0.0
      %662 = vmatmul.mubr.f32.gmra.mxu0 %v595
      %v663 = vpop.f32.mrf.mxu0
      %v664 = vadd.f32 %v590, %v663
      %v665 = vpop.f32.mrf.mxu0
      %666 = vdwg.mxu0
      %667 = vrot.lane.b32.xlu0 %v329, 64
      %v668 = vpop.permute.xlu0 %667
      %v670 = vadd.f32 %v664, %v668
      %v671 = vmax.f32 %v670, 0.0
      %672 = vrot.lane.b32.xlu0 %v144, 64
      %v673 = vpop.permute.xlu0 %672
      %674 = vrot.lane.b32.xlu0 %v145, 64
      %v675 = vpop.permute.xlu0 %674
      %676 = vrot.lane.b32.xlu0 %v146, 64
      %v677 = vpop.permute.xlu0 %676
      %678 = vrot.lane.b32.xlu0 %v147, 64
      %v679 = vpop.permute.xlu0 %678
      %684 = vrot.lane.b32.xlu0 %v329, 32
      %v685 = vpop.permute.xlu0 %684
      %v688 = vsel %vm333, %v671, 0
      %690 = vmatprep.subr.mxu0 0.0
      %691 = vmatpush1.msra.mxu0 0.0
      %692 = vmatprep.subr.mxu0 0.0
      %693 = vmatpush1.msra.mxu0 0.0
      %694 = vmatprep.subr.mxu0 0.0
      %695 = vmatpush1.msra.mxu0 0.0
      %696 = vmatprep.subr.mxu0 0.0
      %697 = vmatpush1.msra.mxu0 0.0
      %698 = vmatprep.subr.mxu0 0.0
      %699 = vmatpush1.msra.mxu0 0.0
      %700 = vmatprep.subr.mxu0 0.0
      %701 = vmatpush1.msra.mxu0 0.0
      %702 = vmatprep.subr.mxu0 0.0
      %703 = vmatpush1.msra.mxu0 0.0
      %704 = vmatprep.subr.mxu0 0.0
      %705 = vmatpush1.msra.mxu0 0.0
      %706 = vmatprep.subr.mxu0 0.0
      %707 = vmatpush1.msra.mxu0 0.0
      %708 = vmatprep.subr.mxu0 0.0
      %709 = vmatpush1.msra.mxu0 0.0
      %710 = vmatprep.subr.mxu0 0.0
      %711 = vmatpush1.msra.mxu0 0.0
      %712 = vmatprep.subr.mxu0 0.0
      %713 = vmatpush1.msra.mxu0 0.0
      %714 = vmatprep.subr.mxu0 0.0
      %715 = vmatpush1.msra.mxu0 %v679
      %716 = vmatprep.subr.mxu0 0.0
      %717 = vmatpush1.msra.mxu0 %v677
      %718 = vmatprep.subr.mxu0 0.0
      %719 = vmatpush1.msra.mxu0 %v675
      %720 = vmatprep.subr.mxu0 0.0
      %721 = vmatpush1.msra.mxu0 %v673
      %722 = vmatprep.subr.mxu0 0.0
      %723 = vmatpush2.msra.mxu0 0.0
      %724 = vmatprep.subr.mxu0 0.0
      %725 = vmatpush2.msra.mxu0 0.0
      %726 = vmatprep.subr.mxu0 0.0
      %727 = vmatpush2.msra.mxu0 0.0
      %728 = vmatprep.subr.mxu0 0.0
      %729 = vmatpush2.msra.mxu0 0.0
      %730 = vmatprep.subr.mxu0 0.0
      %731 = vmatpush2.msra.mxu0 0.0
      %732 = vmatprep.subr.mxu0 0.0
      %733 = vmatpush2.msra.mxu0 0.0
      %734 = vmatprep.subr.mxu0 0.0
      %735 = vmatpush2.msra.mxu0 0.0
      %736 = vmatprep.subr.mxu0 0.0
      %737 = vmatpush2.msra.mxu0 0.0
      %738 = vmatprep.subr.mxu0 0.0
      %739 = vmatpush2.msra.mxu0 0.0
      %740 = vmatprep.subr.mxu0 0.0
      %741 = vmatpush2.msra.mxu0 0.0
      %742 = vmatprep.subr.mxu0 0.0
      %743 = vmatpush2.msra.mxu0 0.0
      %744 = vmatprep.subr.mxu0 0.0
      %745 = vmatpush2.msra.mxu0 0.0
      %746 = vmatprep.subr.mxu0 0.0
      %747 = vmatpush2.msra.mxu0 0.0
      %748 = vmatprep.subr.mxu0 0.0
      %749 = vmatpush2.msra.mxu0 0.0
      %750 = vmatprep.subr.mxu0 0.0
      %751 = vmatpush2.msra.mxu0 0.0
      %752 = vmatprep.subr.mxu0 0.0
      %753 = vmatpush2.msra.mxu0 0.0
      %754 = vmatprep.mubr.f32.mxu0 0.0
      %755 = vmatmul.mubr.f32.gmra.mxu0 %v688
      %v756 = vpop.f32.mrf.mxu0
      %v757 = vadd.f32 %v685, %v756
      %v758 = vpop.f32.mrf.mxu0
      %759 = vdwg.mxu0
      %v760 = vmax.f32 %v757, 0.0
      %765 = vrot.lane.b32.xlu0 %v148, 64
      %v766 = vpop.permute.xlu0 %765
      %767 = vrot.lane.b32.xlu0 %v149, 64
      %v768 = vpop.permute.xlu0 %767
      %769 = vrot.lane.b32.xlu0 %v150, 64
      %v770 = vpop.permute.xlu0 %769
      %771 = vrot.lane.b32.xlu0 %v151, 64
      %v772 = vpop.permute.xlu0 %771
      %777 = vmatprep.subr.mxu0 0.0
      %778 = vmatpush1.msra.mxu0 0.0
      %779 = vmatprep.subr.mxu0 0.0
      %780 = vmatpush1.msra.mxu0 0.0
      %781 = vmatprep.subr.mxu0 0.0
      %782 = vmatpush1.msra.mxu0 0.0
      %783 = vmatprep.subr.mxu0 0.0
      %784 = vmatpush1.msra.mxu0 0.0
      %785 = vmatprep.subr.mxu0 0.0
      %786 = vmatpush1.msra.mxu0 0.0
      %787 = vmatprep.subr.mxu0 0.0
      %788 = vmatpush1.msra.mxu0 0.0
      %789 = vmatprep.subr.mxu0 0.0
      %790 = vmatpush1.msra.mxu0 0.0
      %791 = vmatprep.subr.mxu0 0.0
      %792 = vmatpush1.msra.mxu0 0.0
      %793 = vmatprep.subr.mxu0 0.0
      %794 = vmatpush1.msra.mxu0 0.0
      %795 = vmatprep.subr.mxu0 0.0
      %796 = vmatpush1.msra.mxu0 0.0
      %797 = vmatprep.subr.mxu0 0.0
      %798 = vmatpush1.msra.mxu0 0.0
      %799 = vmatprep.subr.mxu0 0.0
      %800 = vmatpush1.msra.mxu0 0.0
      %801 = vmatprep.subr.mxu0 0.0
      %802 = vmatpush1.msra.mxu0 %v772
      %803 = vmatprep.subr.mxu0 0.0
      %804 = vmatpush1.msra.mxu0 %v770
      %805 = vmatprep.subr.mxu0 0.0
      %806 = vmatpush1.msra.mxu0 %v768
      %807 = vmatprep.subr.mxu0 0.0
      %808 = vmatpush1.msra.mxu0 %v766
      %809 = vmatprep.subr.mxu0 0.0
      %810 = vmatpush2.msra.mxu0 0.0
      %811 = vmatprep.subr.mxu0 0.0
      %812 = vmatpush2.msra.mxu0 0.0
      %813 = vmatprep.subr.mxu0 0.0
      %814 = vmatpush2.msra.mxu0 0.0
      %815 = vmatprep.subr.mxu0 0.0
      %816 = vmatpush2.msra.mxu0 0.0
      %817 = vmatprep.subr.mxu0 0.0
      %818 = vmatpush2.msra.mxu0 0.0
      %819 = vmatprep.subr.mxu0 0.0
      %820 = vmatpush2.msra.mxu0 0.0
      %821 = vmatprep.subr.mxu0 0.0
      %822 = vmatpush2.msra.mxu0 0.0
      %823 = vmatprep.subr.mxu0 0.0
      %824 = vmatpush2.msra.mxu0 0.0
      %825 = vmatprep.subr.mxu0 0.0
      %826 = vmatpush2.msra.mxu0 0.0
      %827 = vmatprep.subr.mxu0 0.0
      %828 = vmatpush2.msra.mxu0 0.0
      %829 = vmatprep.subr.mxu0 0.0
      %830 = vmatpush2.msra.mxu0 0.0
      %831 = vmatprep.subr.mxu0 0.0
      %832 = vmatpush2.msra.mxu0 0.0
      %833 = vmatprep.subr.mxu0 0.0
      %834 = vmatpush2.msra.mxu0 0.0
      %835 = vmatprep.subr.mxu0 0.0
      %836 = vmatpush2.msra.mxu0 0.0
      %837 = vmatprep.subr.mxu0 0.0
      %838 = vmatpush2.msra.mxu0 0.0
      %839 = vmatprep.subr.mxu0 0.0
      %840 = vmatpush2.msra.mxu0 0.0
      %841 = vmatprep.mubr.f32.mxu0 0.0
      %842 = vmatmul.mubr.f32.gmra.mxu0 %v428
      %v843 = vpop.f32.mrf.mxu0
      %v844 = vadd.f32 0.0, %v843
      %v845 = vpop.f32.mrf.mxu0
      %846 = vdwg.mxu0
      %847 = vrot.lane.b32.xlu0 %v148, 80
      %v848 = vpop.permute.xlu0 %847
      %849 = vrot.lane.b32.xlu0 %v149, 80
      %v850 = vpop.permute.xlu0 %849
      %851 = vrot.lane.b32.xlu0 %v150, 80
      %v852 = vpop.permute.xlu0 %851
      %853 = vrot.lane.b32.xlu0 %v151, 80
      %v854 = vpop.permute.xlu0 %853
      %859 = vmatprep.subr.mxu0 0.0
      %860 = vmatpush1.msra.mxu0 0.0
      %861 = vmatprep.subr.mxu0 0.0
      %862 = vmatpush1.msra.mxu0 0.0
      %863 = vmatprep.subr.mxu0 0.0
      %864 = vmatpush1.msra.mxu0 0.0
      %865 = vmatprep.subr.mxu0 0.0
      %866 = vmatpush1.msra.mxu0 0.0
      %867 = vmatprep.subr.mxu0 0.0
      %868 = vmatpush1.msra.mxu0 0.0
      %869 = vmatprep.subr.mxu0 0.0
      %870 = vmatpush1.msra.mxu0 0.0
      %871 = vmatprep.subr.mxu0 0.0
      %872 = vmatpush1.msra.mxu0 0.0
      %873 = vmatprep.subr.mxu0 0.0
      %874 = vmatpush1.msra.mxu0 0.0
      %875 = vmatprep.subr.mxu0 0.0
      %876 = vmatpush1.msra.mxu0 0.0
      %877 = vmatprep.subr.mxu0 0.0
      %878 = vmatpush1.msra.mxu0 0.0
      %879 = vmatprep.subr.mxu0 0.0
      %880 = vmatpush1.msra.mxu0 0.0
      %881 = vmatprep.subr.mxu0 0.0
      %882 = vmatpush1.msra.mxu0 0.0
      %883 = vmatprep.subr.mxu0 0.0
      %884 = vmatpush1.msra.mxu0 %v854
      %885 = vmatprep.subr.mxu0 0.0
      %886 = vmatpush1.msra.mxu0 %v852
      %887 = vmatprep.subr.mxu0 0.0
      %888 = vmatpush1.msra.mxu0 %v850
      %889 = vmatprep.subr.mxu0 0.0
      %890 = vmatpush1.msra.mxu0 %v848
      %891 = vmatprep.subr.mxu0 0.0
      %892 = vmatpush2.msra.mxu0 0.0
      %893 = vmatprep.subr.mxu0 0.0
      %894 = vmatpush2.msra.mxu0 0.0
      %895 = vmatprep.subr.mxu0 0.0
      %896 = vmatpush2.msra.mxu0 0.0
      %897 = vmatprep.subr.mxu0 0.0
      %898 = vmatpush2.msra.mxu0 0.0
      %899 = vmatprep.subr.mxu0 0.0
      %900 = vmatpush2.msra.mxu0 0.0
      %901 = vmatprep.subr.mxu0 0.0
      %902 = vmatpush2.msra.mxu0 0.0
      %903 = vmatprep.subr.mxu0 0.0
      %904 = vmatpush2.msra.mxu0 0.0
      %905 = vmatprep.subr.mxu0 0.0
      %906 = vmatpush2.msra.mxu0 0.0
      %907 = vmatprep.subr.mxu0 0.0
      %908 = vmatpush2.msra.mxu0 0.0
      %909 = vmatprep.subr.mxu0 0.0
      %910 = vmatpush2.msra.mxu0 0.0
      %911 = vmatprep.subr.mxu0 0.0
      %912 = vmatpush2.msra.mxu0 0.0
      %913 = vmatprep.subr.mxu0 0.0
      %914 = vmatpush2.msra.mxu0 0.0
      %915 = vmatprep.subr.mxu0 0.0
      %916 = vmatpush2.msra.mxu0 0.0
      %917 = vmatprep.subr.mxu0 0.0
      %918 = vmatpush2.msra.mxu0 0.0
      %919 = vmatprep.subr.mxu0 0.0
      %920 = vmatpush2.msra.mxu0 0.0
      %921 = vmatprep.subr.mxu0 0.0
      %922 = vmatpush2.msra.mxu0 0.0
      %923 = vmatprep.mubr.f32.mxu0 0.0
      %924 = vmatmul.mubr.f32.gmra.mxu0 %v334
      %v925 = vpop.f32.mrf.mxu0
      %v926 = vadd.f32 %v844, %v925
      %v927 = vpop.f32.mrf.mxu0
      %928 = vdwg.mxu0
      %937 = vrot.lane.b32.xlu0 %v148, 96
      %v938 = vpop.permute.xlu0 %937
      %939 = vrot.lane.b32.xlu0 %v149, 96
      %v940 = vpop.permute.xlu0 %939
      %941 = vrot.lane.b32.xlu0 %v150, 96
      %v942 = vpop.permute.xlu0 %941
      %943 = vrot.lane.b32.xlu0 %v151, 96
      %v944 = vpop.permute.xlu0 %943
      %945 = vrot.lane.b32.xlu0 %v152, 96
      %v946 = vpop.permute.xlu0 %945
      %947 = vrot.lane.b32.xlu0 %v153, 96
      %v948 = vpop.permute.xlu0 %947
      %949 = vrot.lane.b32.xlu0 %v154, 96
      %v950 = vpop.permute.xlu0 %949
      %951 = vrot.lane.b32.xlu0 %v155, 96
      %v952 = vpop.permute.xlu0 %951
      %953 = vrot.lane.b32.xlu0 %v156, 96
      %v954 = vpop.permute.xlu0 %953
      %955 = vrot.lane.b32.xlu0 %v157, 96
      %v956 = vpop.permute.xlu0 %955
      %957 = vrot.lane.b32.xlu0 %v158, 96
      %v958 = vpop.permute.xlu0 %957
      %959 = vrot.lane.b32.xlu0 %v159, 96
      %v960 = vpop.permute.xlu0 %959
      %v973 = vsel %vm593, %v238, 0
      %975 = vmatprep.subr.mxu0 0.0
      %976 = vmatpush1.msra.mxu0 0.0
      %977 = vmatprep.subr.mxu0 0.0
      %978 = vmatpush1.msra.mxu0 0.0
      %979 = vmatprep.subr.mxu0 0.0
      %980 = vmatpush1.msra.mxu0 0.0
      %981 = vmatprep.subr.mxu0 0.0
      %982 = vmatpush1.msra.mxu0 0.0
      %983 = vmatprep.subr.mxu0 0.0
      %984 = vmatpush1.msra.mxu0 %v960
      %985 = vmatprep.subr.mxu0 0.0
      %986 = vmatpush1.msra.mxu0 %v958
      %987 = vmatprep.subr.mxu0 0.0
      %988 = vmatpush1.msra.mxu0 %v956
      %989 = vmatprep.subr.mxu0 0.0
      %990 = vmatpush1.msra.mxu0 %v954
      %991 = vmatprep.subr.mxu0 0.0
      %992 = vmatpush1.msra.mxu0 %v952
      %993 = vmatprep.subr.mxu0 0.0
      %994 = vmatpush1.msra.mxu0 %v950
      %995 = vmatprep.subr.mxu0 0.0
      %996 = vmatpush1.msra.mxu0 %v948
      %997 = vmatprep.subr.mxu0 0.0
      %998 = vmatpush1.msra.mxu0 %v946
      %999 = vmatprep.subr.mxu0 0.0
      %1000 = vmatpush1.msra.mxu0 %v944
      %1001 = vmatprep.subr.mxu0 0.0
      %1002 = vmatpush1.msra.mxu0 %v942
      %1003 = vmatprep.subr.mxu0 0.0
      %1004 = vmatpush1.msra.mxu0 %v940
      %1005 = vmatprep.subr.mxu0 0.0
      %1006 = vmatpush1.msra.mxu0 %v938
      %1007 = vmatprep.subr.mxu0 0.0
      %1008 = vmatpush2.msra.mxu0 0.0
      %1009 = vmatprep.subr.mxu0 0.0
      %1010 = vmatpush2.msra.mxu0 0.0
      %1011 = vmatprep.subr.mxu0 0.0
      %1012 = vmatpush2.msra.mxu0 0.0
      %1013 = vmatprep.subr.mxu0 0.0
      %1014 = vmatpush2.msra.mxu0 0.0
      %1015 = vmatprep.subr.mxu0 0.0
      %1016 = vmatpush2.msra.mxu0 0.0
      %1017 = vmatprep.subr.mxu0 0.0
      %1018 = vmatpush2.msra.mxu0 0.0
      %1019 = vmatprep.subr.mxu0 0.0
      %1020 = vmatpush2.msra.mxu0 0.0
      %1021 = vmatprep.subr.mxu0 0.0
      %1022 = vmatpush2.msra.mxu0 0.0
      %1023 = vmatprep.subr.mxu0 0.0
      %1024 = vmatpush2.msra.mxu0 0.0
      %1025 = vmatprep.subr.mxu0 0.0
      %1026 = vmatpush2.msra.mxu0 0.0
      %1027 = vmatprep.subr.mxu0 0.0
      %1028 = vmatpush2.msra.mxu0 0.0
      %1029 = vmatprep.subr.mxu0 0.0
      %1030 = vmatpush2.msra.mxu0 0.0
      %1031 = vmatprep.subr.mxu0 0.0
      %1032 = vmatpush2.msra.mxu0 0.0
      %1033 = vmatprep.subr.mxu0 0.0
      %1034 = vmatpush2.msra.mxu0 0.0
      %1035 = vmatprep.subr.mxu0 0.0
      %1036 = vmatpush2.msra.mxu0 0.0
      %1037 = vmatprep.subr.mxu0 0.0
      %1038 = vmatpush2.msra.mxu0 0.0
      %1039 = vmatprep.mubr.f32.mxu0 0.0
      %1040 = vmatmul.mubr.f32.gmra.mxu0 %v973
      %v1041 = vpop.f32.mrf.mxu0
      %v1042 = vadd.f32 0.0, %v1041
      %v1043 = vpop.f32.mrf.mxu0
      %1044 = vdwg.mxu0
      %v1045 = vadd.f32 %v926, %v1042
      %1046 = vrot.lane.b32.xlu0 %v148, 48
      %v1047 = vpop.permute.xlu0 %1046
      %1048 = vrot.lane.b32.xlu0 %v149, 48
      %v1049 = vpop.permute.xlu0 %1048
      %1050 = vrot.lane.b32.xlu0 %v150, 48
      %v1051 = vpop.permute.xlu0 %1050
      %1052 = vrot.lane.b32.xlu0 %v151, 48
      %v1053 = vpop.permute.xlu0 %1052
      %1058 = vmatprep.subr.mxu0 0.0
      %1059 = vmatpush1.msra.mxu0 0.0
      %1060 = vmatprep.subr.mxu0 0.0
      %1061 = vmatpush1.msra.mxu0 0.0
      %1062 = vmatprep.subr.mxu0 0.0
      %1063 = vmatpush1.msra.mxu0 0.0
      %1064 = vmatprep.subr.mxu0 0.0
      %1065 = vmatpush1.msra.mxu0 0.0
      %1066 = vmatprep.subr.mxu0 0.0
      %1067 = vmatpush1.msra.mxu0 0.0
      %1068 = vmatprep.subr.mxu0 0.0
      %1069 = vmatpush1.msra.mxu0 0.0
      %1070 = vmatprep.subr.mxu0 0.0
      %1071 = vmatpush1.msra.mxu0 0.0
      %1072 = vmatprep.subr.mxu0 0.0
      %1073 = vmatpush1.msra.mxu0 0.0
      %1074 = vmatprep.subr.mxu0 0.0
      %1075 = vmatpush1.msra.mxu0 0.0
      %1076 = vmatprep.subr.mxu0 0.0
      %1077 = vmatpush1.msra.mxu0 0.0
      %1078 = vmatprep.subr.mxu0 0.0
      %1079 = vmatpush1.msra.mxu0 0.0
      %1080 = vmatprep.subr.mxu0 0.0
      %1081 = vmatpush1.msra.mxu0 0.0
      %1082 = vmatprep.subr.mxu0 0.0
      %1083 = vmatpush1.msra.mxu0 %v1053
      %1084 = vmatprep.subr.mxu0 0.0
      %1085 = vmatpush1.msra.mxu0 %v1051
      %1086 = vmatprep.subr.mxu0 0.0
      %1087 = vmatpush1.msra.mxu0 %v1049
      %1088 = vmatprep.subr.mxu0 0.0
      %1089 = vmatpush1.msra.mxu0 %v1047
      %1090 = vmatprep.subr.mxu0 0.0
      %1091 = vmatpush2.msra.mxu0 0.0
      %1092 = vmatprep.subr.mxu0 0.0
      %1093 = vmatpush2.msra.mxu0 0.0
      %1094 = vmatprep.subr.mxu0 0.0
      %1095 = vmatpush2.msra.mxu0 0.0
      %1096 = vmatprep.subr.mxu0 0.0
      %1097 = vmatpush2.msra.mxu0 0.0
      %1098 = vmatprep.subr.mxu0 0.0
      %1099 = vmatpush2.msra.mxu0 0.0
      %1100 = vmatprep.subr.mxu0 0.0
      %1101 = vmatpush2.msra.mxu0 0.0
      %1102 = vmatprep.subr.mxu0 0.0
      %1103 = vmatpush2.msra.mxu0 0.0
      %1104 = vmatprep.subr.mxu0 0.0
      %1105 = vmatpush2.msra.mxu0 0.0
      %1106 = vmatprep.subr.mxu0 0.0
      %1107 = vmatpush2.msra.mxu0 0.0
      %1108 = vmatprep.subr.mxu0 0.0
      %1109 = vmatpush2.msra.mxu0 0.0
      %1110 = vmatprep.subr.mxu0 0.0
      %1111 = vmatpush2.msra.mxu0 0.0
      %1112 = vmatprep.subr.mxu0 0.0
      %1113 = vmatpush2.msra.mxu0 0.0
      %1114 = vmatprep.subr.mxu0 0.0
      %1115 = vmatpush2.msra.mxu0 0.0
      %1116 = vmatprep.subr.mxu0 0.0
      %1117 = vmatpush2.msra.mxu0 0.0
      %1118 = vmatprep.subr.mxu0 0.0
      %1119 = vmatpush2.msra.mxu0 0.0
      %1120 = vmatprep.subr.mxu0 0.0
      %1121 = vmatpush2.msra.mxu0 0.0
      %1122 = vmatprep.mubr.f32.mxu0 0.0
      %1123 = vmatmul.mubr.f32.gmra.mxu0 %v688
      %v1124 = vpop.f32.mrf.mxu0
      %v1125 = vadd.f32 0.0, %v1124
      %v1126 = vpop.f32.mrf.mxu0
      %1127 = vdwg.mxu0
      %v1128 = vadd.f32 %v1045, %v1125
      %1129 = vrot.lane.b32.xlu0 %v148, 32
      %v1130 = vpop.permute.xlu0 %1129
      %1131 = vrot.lane.b32.xlu0 %v149, 32
      %v1132 = vpop.permute.xlu0 %1131
      %1133 = vrot.lane.b32.xlu0 %v150, 32
      %v1134 = vpop.permute.xlu0 %1133
      %1135 = vrot.lane.b32.xlu0 %v151, 32
      %v1136 = vpop.permute.xlu0 %1135
      %v1142 = vsel %vm333, %v760, 0
      %1144 = vmatprep.subr.mxu0 0.0
      %1145 = vmatpush1.msra.mxu0 0.0
      %1146 = vmatprep.subr.mxu0 0.0
      %1147 = vmatpush1.msra.mxu0 0.0
      %1148 = vmatprep.subr.mxu0 0.0
      %1149 = vmatpush1.msra.mxu0 0.0
      %1150 = vmatprep.subr.mxu0 0.0
      %1151 = vmatpush1.msra.mxu0 0.0
      %1152 = vmatprep.subr.mxu0 0.0
      %1153 = vmatpush1.msra.mxu0 0.0
      %1154 = vmatprep.subr.mxu0 0.0
      %1155 = vmatpush1.msra.mxu0 0.0
      %1156 = vmatprep.subr.mxu0 0.0
      %1157 = vmatpush1.msra.mxu0 0.0
      %1158 = vmatprep.subr.mxu0 0.0
      %1159 = vmatpush1.msra.mxu0 0.0
      %1160 = vmatprep.subr.mxu0 0.0
      %1161 = vmatpush1.msra.mxu0 0.0
      %1162 = vmatprep.subr.mxu0 0.0
      %1163 = vmatpush1.msra.mxu0 0.0
      %1164 = vmatprep.subr.mxu0 0.0
      %1165 = vmatpush1.msra.mxu0 0.0
      %1166 = vmatprep.subr.mxu0 0.0
      %1167 = vmatpush1.msra.mxu0 0.0
      %1168 = vmatprep.subr.mxu0 0.0
      %1169 = vmatpush1.msra.mxu0 %v1136
      %1170 = vmatprep.subr.mxu0 0.0
      %1171 = vmatpush1.msra.mxu0 %v1134
      %1172 = vmatprep.subr.mxu0 0.0
      %1173 = vmatpush1.msra.mxu0 %v1132
      %1174 = vmatprep.subr.mxu0 0.0
      %1175 = vmatpush1.msra.mxu0 %v1130
      %1176 = vmatprep.subr.mxu0 0.0
      %1177 = vmatpush2.msra.mxu0 0.0
      %1178 = vmatprep.subr.mxu0 0.0
      %1179 = vmatpush2.msra.mxu0 0.0
      %1180 = vmatprep.subr.mxu0 0.0
      %1181 = vmatpush2.msra.mxu0 0.0
      %1182 = vmatprep.subr.mxu0 0.0
      %1183 = vmatpush2.msra.mxu0 0.0
      %1184 = vmatprep.subr.mxu0 0.0
      %1185 = vmatpush2.msra.mxu0 0.0
      %1186 = vmatprep.subr.mxu0 0.0
      %1187 = vmatpush2.msra.mxu0 0.0
      %1188 = vmatprep.subr.mxu0 0.0
      %1189 = vmatpush2.msra.mxu0 0.0
      %1190 = vmatprep.subr.mxu0 0.0
      %1191 = vmatpush2.msra.mxu0 0.0
      %1192 = vmatprep.subr.mxu0 0.0
      %1193 = vmatpush2.msra.mxu0 0.0
      %1194 = vmatprep.subr.mxu0 0.0
      %1195 = vmatpush2.msra.mxu0 0.0
      %1196 = vmatprep.subr.mxu0 0.0
      %1197 = vmatpush2.msra.mxu0 0.0
      %1198 = vmatprep.subr.mxu0 0.0
      %1199 = vmatpush2.msra.mxu0 0.0
      %1200 = vmatprep.subr.mxu0 0.0
      %1201 = vmatpush2.msra.mxu0 0.0
      %1202 = vmatprep.subr.mxu0 0.0
      %1203 = vmatpush2.msra.mxu0 0.0
      %1204 = vmatprep.subr.mxu0 0.0
      %1205 = vmatpush2.msra.mxu0 0.0
      %1206 = vmatprep.subr.mxu0 0.0
      %1207 = vmatpush2.msra.mxu0 0.0
      %1208 = vmatprep.mubr.f32.mxu0 0.0
      %1209 = vmatmul.mubr.f32.gmra.mxu0 %v1142
      %v1210 = vpop.f32.mrf.mxu0
      %v1211 = vadd.f32 0.0, %v1210
      %v1212 = vpop.f32.mrf.mxu0
      %1213 = vdwg.mxu0
      %v1214 = vadd.f32 %v1128, %v1211
      %1215 = vrot.lane.b32.xlu0 %v148, 16
      %v1216 = vpop.permute.xlu0 %1215
      %1217 = vrot.lane.b32.xlu0 %v149, 16
      %v1218 = vpop.permute.xlu0 %1217
      %1219 = vrot.lane.b32.xlu0 %v150, 16
      %v1220 = vpop.permute.xlu0 %1219
      %1221 = vrot.lane.b32.xlu0 %v151, 16
      %v1222 = vpop.permute.xlu0 %1221
      %v1228 = vsel %vm333, %v500, 0
      %1230 = vmatprep.subr.mxu0 0.0
      %1231 = vmatpush1.msra.mxu0 0.0
      %1232 = vmatprep.subr.mxu0 0.0
      %1233 = vmatpush1.msra.mxu0 0.0
      %1234 = vmatprep.subr.mxu0 0.0
      %1235 = vmatpush1.msra.mxu0 0.0
      %1236 = vmatprep.subr.mxu0 0.0
      %1237 = vmatpush1.msra.mxu0 0.0
      %1238 = vmatprep.subr.mxu0 0.0
      %1239 = vmatpush1.msra.mxu0 0.0
      %1240 = vmatprep.subr.mxu0 0.0
      %1241 = vmatpush1.msra.mxu0 0.0
      %1242 = vmatprep.subr.mxu0 0.0
      %1243 = vmatpush1.msra.mxu0 0.0
      %1244 = vmatprep.subr.mxu0 0.0
      %1245 = vmatpush1.msra.mxu0 0.0
      %1246 = vmatprep.subr.mxu0 0.0
      %1247 = vmatpush1.msra.mxu0 0.0
      %1248 = vmatprep.subr.mxu0 0.0
      %1249 = vmatpush1.msra.mxu0 0.0
      %1250 = vmatprep.subr.mxu0 0.0
      %1251 = vmatpush1.msra.mxu0 0.0
      %1252 = vmatprep.subr.mxu0 0.0
      %1253 = vmatpush1.msra.mxu0 0.0
      %1254 = vmatprep.subr.mxu0 0.0
      %1255 = vmatpush1.msra.mxu0 %v1222
      %1256 = vmatprep.subr.mxu0 0.0
      %1257 = vmatpush1.msra.mxu0 %v1220
      %1258 = vmatprep.subr.mxu0 0.0
      %1259 = vmatpush1.msra.mxu0 %v1218
      %1260 = vmatprep.subr.mxu0 0.0
      %1261 = vmatpush1.msra.mxu0 %v1216
      %1262 = vmatprep.subr.mxu0 0.0
      %1263 = vmatpush2.msra.mxu0 0.0
      %1264 = vmatprep.subr.mxu0 0.0
      %1265 = vmatpush2.msra.mxu0 0.0
      %1266 = vmatprep.subr.mxu0 0.0
      %1267 = vmatpush2.msra.mxu0 0.0
      %1268 = vmatprep.subr.mxu0 0.0
      %1269 = vmatpush2.msra.mxu0 0.0
      %1270 = vmatprep.subr.mxu0 0.0
      %1271 = vmatpush2.msra.mxu0 0.0
      %1272 = vmatprep.subr.mxu0 0.0
      %1273 = vmatpush2.msra.mxu0 0.0
      %1274 = vmatprep.subr.mxu0 0.0
      %1275 = vmatpush2.msra.mxu0 0.0
      %1276 = vmatprep.subr.mxu0 0.0
      %1277 = vmatpush2.msra.mxu0 0.0
      %1278 = vmatprep.subr.mxu0 0.0
      %1279 = vmatpush2.msra.mxu0 0.0
      %1280 = vmatprep.subr.mxu0 0.0
      %1281 = vmatpush2.msra.mxu0 0.0
      %1282 = vmatprep.subr.mxu0 0.0
      %1283 = vmatpush2.msra.mxu0 0.0
      %1284 = vmatprep.subr.mxu0 0.0
      %1285 = vmatpush2.msra.mxu0 0.0
      %1286 = vmatprep.subr.mxu0 0.0
      %1287 = vmatpush2.msra.mxu0 0.0
      %1288 = vmatprep.subr.mxu0 0.0
      %1289 = vmatpush2.msra.mxu0 0.0
      %1290 = vmatprep.subr.mxu0 0.0
      %1291 = vmatpush2.msra.mxu0 0.0
      %1292 = vmatprep.subr.mxu0 0.0
      %1293 = vmatpush2.msra.mxu0 0.0
      %1294 = vmatprep.mubr.f32.mxu0 0.0
      %1295 = vmatmul.mubr.f32.gmra.mxu0 %v1228
      %v1296 = vpop.f32.mrf.mxu0
      %v1297 = vadd.f32 0.0, %v1296
      %v1298 = vpop.f32.mrf.mxu0
      %1299 = vdwg.mxu0
      %v1300 = vadd.f32 %v1214, %v1297
      %v1301 = vlaneseq
      %v1302 = vshrl.u32 %v1301, 7
      %v1303 = vsub.s32 0, %v1302
      %v1304 = vrot.slane %v163, %v1303
      %v1305 = vadd.f32 %v1300, %v1304
      %1306 = vrot.lane.b32.xlu0 %v152, 80
      %v1307 = vpop.permute.xlu0 %1306
      %1308 = vrot.lane.b32.xlu0 %v153, 80
      %v1309 = vpop.permute.xlu0 %1308
      %v1313 = vsel %vm164, %v1305, 0
      %1315 = vmatprep.subr.mxu0 0.0
      %1316 = vmatpush1.msra.mxu0 0.0
      %1317 = vmatprep.subr.mxu0 0.0
      %1318 = vmatpush1.msra.mxu0 0.0
      %1319 = vmatprep.subr.mxu0 0.0
      %1320 = vmatpush1.msra.mxu0 0.0
      %1321 = vmatprep.subr.mxu0 0.0
      %1322 = vmatpush1.msra.mxu0 0.0
      %1323 = vmatprep.subr.mxu0 0.0
      %1324 = vmatpush1.msra.mxu0 0.0
      %1325 = vmatprep.subr.mxu0 0.0
      %1326 = vmatpush1.msra.mxu0 0.0
      %1327 = vmatprep.subr.mxu0 0.0
      %1328 = vmatpush1.msra.mxu0 0.0
      %1329 = vmatprep.subr.mxu0 0.0
      %1330 = vmatpush1.msra.mxu0 0.0
      %1331 = vmatprep.subr.mxu0 0.0
      %1332 = vmatpush1.msra.mxu0 0.0
      %1333 = vmatprep.subr.mxu0 0.0
      %1334 = vmatpush1.msra.mxu0 0.0
      %1335 = vmatprep.subr.mxu0 0.0
      %1336 = vmatpush1.msra.mxu0 0.0
      %1337 = vmatprep.subr.mxu0 0.0
      %1338 = vmatpush1.msra.mxu0 0.0
      %1339 = vmatprep.subr.mxu0 0.0
      %1340 = vmatpush1.msra.mxu0 0.0
      %1341 = vmatprep.subr.mxu0 0.0
      %1342 = vmatpush1.msra.mxu0 0.0
      %1343 = vmatprep.subr.mxu0 0.0
      %1344 = vmatpush1.msra.mxu0 %v1309
      %1345 = vmatprep.subr.mxu0 0.0
      %1346 = vmatpush1.msra.mxu0 %v1307
      %1347 = vmatprep.subr.mxu0 0.0
      %1348 = vmatpush2.msra.mxu0 0.0
      %1349 = vmatprep.subr.mxu0 0.0
      %1350 = vmatpush2.msra.mxu0 0.0
      %1351 = vmatprep.subr.mxu0 0.0
      %1352 = vmatpush2.msra.mxu0 0.0
      %1353 = vmatprep.subr.mxu0 0.0
      %1354 = vmatpush2.msra.mxu0 0.0
      %1355 = vmatprep.subr.mxu0 0.0
      %1356 = vmatpush2.msra.mxu0 0.0
      %1357 = vmatprep.subr.mxu0 0.0
      %1358 = vmatpush2.msra.mxu0 0.0
      %1359 = vmatprep.subr.mxu0 0.0
      %1360 = vmatpush2.msra.mxu0 0.0
      %1361 = vmatprep.subr.mxu0 0.0
      %1362 = vmatpush2.msra.mxu0 0.0
      %1363 = vmatprep.subr.mxu0 0.0
      %1364 = vmatpush2.msra.mxu0 0.0
      %1365 = vmatprep.subr.mxu0 0.0
      %1366 = vmatpush2.msra.mxu0 0.0
      %1367 = vmatprep.subr.mxu0 0.0
      %1368 = vmatpush2.msra.mxu0 0.0
      %1369 = vmatprep.subr.mxu0 0.0
      %1370 = vmatpush2.msra.mxu0 0.0
      %1371 = vmatprep.subr.mxu0 0.0
      %1372 = vmatpush2.msra.mxu0 0.0
      %1373 = vmatprep.subr.mxu0 0.0
      %1374 = vmatpush2.msra.mxu0 0.0
      %1375 = vmatprep.subr.mxu0 0.0
      %1376 = vmatpush2.msra.mxu0 0.0
      %1377 = vmatprep.subr.mxu0 0.0
      %1378 = vmatpush2.msra.mxu0 0.0
      %1379 = vmatprep.mubr.f32.mxu0 0.0
      %1380 = vmatmul.mubr.f32.gmra.mxu0 %v1313
      %v1381 = vpop.f32.mrf.mxu0
      %v1382 = vadd.f32 0.0, %v1381
      %v1383 = vpop.f32.mrf.mxu0
      %1384 = vdwg.mxu0
      %v1385 = vsub.f32 %v1382, %v1305
      %v1386 = vmul.f32 %v1385, 1.442695
      %v1387 = vpow.pop %v1386
      %v1388 = vadd.f32 %v1387, 1.0
      %v1389 = vrcp.pop %v1388
      %v1390 = vmul.f32 1.0, %v1389
      %1392 = vrot.lane.b32.xlu0 %v325, 16
      %v1393 = vpop.permute.xlu0 %1392
      %v1395 = vmul.f32 %v1390, %v1393
      %v1397 = vsel %vm164, %v1395, 0
      %1399 = vmatprep.subr.mxu0 0.0
      %1400 = vmatpush1.msra.mxu0 0.0
      %1401 = vmatprep.subr.mxu0 0.0
      %1402 = vmatpush1.msra.mxu0 0.0
      %1403 = vmatprep.subr.mxu0 0.0
      %1404 = vmatpush1.msra.mxu0 0.0
      %1405 = vmatprep.subr.mxu0 0.0
      %1406 = vmatpush1.msra.mxu0 0.0
      %1407 = vmatprep.subr.mxu0 0.0
      %1408 = vmatpush1.msra.mxu0 0.0
      %1409 = vmatprep.subr.mxu0 0.0
      %1410 = vmatpush1.msra.mxu0 0.0
      %1411 = vmatprep.subr.mxu0 0.0
      %1412 = vmatpush1.msra.mxu0 0.0
      %1413 = vmatprep.subr.mxu0 0.0
      %1414 = vmatpush1.msra.mxu0 0.0
      %1415 = vmatprep.subr.mxu0 0.0
      %1416 = vmatpush1.msra.mxu0 0.0
      %1417 = vmatprep.subr.mxu0 0.0
      %1418 = vmatpush1.msra.mxu0 0.0
      %1419 = vmatprep.subr.mxu0 0.0
      %1420 = vmatpush1.msra.mxu0 0.0
      %1421 = vmatprep.subr.mxu0 0.0
      %1422 = vmatpush1.msra.mxu0 0.0
      %1423 = vmatprep.subr.mxu0 0.0
      %1424 = vmatpush1.msra.mxu0 0.0
      %1425 = vmatprep.subr.mxu0 0.0
      %1426 = vmatpush1.msra.mxu0 0.0
      %1427 = vmatprep.subr.mxu0 0.0
      %1428 = vmatpush1.msra.mxu0 %v161
      %1429 = vmatprep.subr.mxu0 0.0
      %1430 = vmatpush1.msra.mxu0 %v160
      %1431 = vmatprep.subr.mxu0 0.0
      %1432 = vmatpush2.msra.mxu0 0.0
      %1433 = vmatprep.subr.mxu0 0.0
      %1434 = vmatpush2.msra.mxu0 0.0
      %1435 = vmatprep.subr.mxu0 0.0
      %1436 = vmatpush2.msra.mxu0 0.0
      %1437 = vmatprep.subr.mxu0 0.0
      %1438 = vmatpush2.msra.mxu0 0.0
      %1439 = vmatprep.subr.mxu0 0.0
      %1440 = vmatpush2.msra.mxu0 0.0
      %1441 = vmatprep.subr.mxu0 0.0
      %1442 = vmatpush2.msra.mxu0 0.0
      %1443 = vmatprep.subr.mxu0 0.0
      %1444 = vmatpush2.msra.mxu0 0.0
      %1445 = vmatprep.subr.mxu0 0.0
      %1446 = vmatpush2.msra.mxu0 0.0
      %1447 = vmatprep.subr.mxu0 0.0
      %1448 = vmatpush2.msra.mxu0 0.0
      %1449 = vmatprep.subr.mxu0 0.0
      %1450 = vmatpush2.msra.mxu0 0.0
      %1451 = vmatprep.subr.mxu0 0.0
      %1452 = vmatpush2.msra.mxu0 0.0
      %1453 = vmatprep.subr.mxu0 0.0
      %1454 = vmatpush2.msra.mxu0 0.0
      %1455 = vmatprep.subr.mxu0 0.0
      %1456 = vmatpush2.msra.mxu0 0.0
      %1457 = vmatprep.subr.mxu0 0.0
      %1458 = vmatpush2.msra.mxu0 0.0
      %1459 = vmatprep.subr.mxu0 0.0
      %1460 = vmatpush2.msra.mxu0 0.0
      %1461 = vmatprep.subr.mxu0 0.0
      %1462 = vmatpush2.msra.mxu0 0.0
      %1463 = vmatprep.mubr.f32.mxu0 0.0
      %1464 = vmatmul.mubr.f32.gmra.mxu0 %v1397
      %v1465 = vpop.f32.mrf.mxu0
      %v1466 = vadd.f32 0.0, %v1465
      %v1467 = vpop.f32.mrf.mxu0
      %1468 = vdwg.mxu0
      %1469 = vst [vmem:[%s138] sm:$0xff] %v1466
      %p1470 = scmp.lt.s32.totalorder %s13, 1
      %s1471 = scalar_select %p1470, %s13, 1
      %s1472 = smul.addr %s1471, 8
      %s1473 = scalar_lea.vmem %s2, %s1472
      // Predicated region
      $region29: #{auxnet_forward.1} parent=27 // pred_check
        %p1474 = pneg %p78
      $region30: #{auxnet_forward.1} parent=27 // pred_check_branch
        %1476 = sbr.rel (%p1474) target = $region32
      $region31: #{auxnet_forward.1} parent=27 // pred_region
        _
      $region32: #{auxnet_forward.1} parent=27 // pred_fallthru
        _
    $region28: #{auxnet_forward.1} parent=5 // pred_fallthru
      _
    %p1477 = scmp.le.s32.totalorder 2, %s8
    // Predicated region
    $region33: #{auxnet_forward.1} parent=5 // pred_check
      %p1478 = pneg %p1477
    $region34: #{auxnet_forward.1} parent=5 // pred_check_branch
      %1480 = sbr.rel (%p1478) target = $region36
    $region35: #{auxnet_forward.1} parent=5 // pred_region
      %s1481 = ssub.s32 %s8, 2
      // Predicated region
      $region37: #{auxnet_forward.1} parent=35 // pred_check
        %p1482 = pneg %p84
      $region38: #{auxnet_forward.1} parent=35 // pred_check_branch
        %1484 = sbr.rel (%p1482) target = $region40
      $region39: #{auxnet_forward.1} parent=35 // pred_region
        %p1485 = scmp.lt.s32.totalorder %s14, 1
        %s1486 = scalar_select %p1485, %s14, 1
        %s1487 = smul.addr %s1486, 8
        %s1488 = scalar_lea.vmem %s2, %s1487
      $region40: #{auxnet_forward.1} parent=35 // pred_fallthru
        _
    $region36: #{auxnet_forward.1} parent=5 // pred_fallthru
      _
  $region6: #{auxnet_forward.1} parent=0 // loop_footer
    %s12 = sadd.s32 1, %s8
  $region7: #{auxnet_forward.1} parent=0 // loop_footer_branch
    %7 = sbr.rel target = $region3
  $region8: #{auxnet_forward.1} parent=0 // loop_exit
    _

</llo_original>
